<compile_context>
chip_gen: v7x
topology: tpu7x:2x2x1
jax: 0.10.0
libtpu: 0.0.40
codegen_flags: <defaults>
</compile_context>

<pallas_src>
import functools

import jax
import jax.numpy as jnp
from jax.experimental import pallas as pl
from jax.experimental.pallas import tpu as pltpu

TOKENS = 4          # stacked features: prev, curr, prev*curr, curr-prev
MLP_RATIO = 4       # channel-MLP hidden = MLP_RATIO * dim


def _round_up(x, m):
    return ((x + m - 1) // m) * m


def _device_kind():
    try:
        return jax.devices()[0].device_kind.lower()
    except Exception:  # pragma: no cover - defensive
        return ""


# ----------------------------- Pallas kernel -------------------------------
def _params_transfer_kernel(
    # SMEM: folded token-mix coefficients, (TOKENS+1, 3); rows 0..3 are the
    # per-token coeffs of [prev, curr, prod], row TOKENS is the column sums.
    wc_ref,
    # VMEM tensors (blocked over rows)
    prev_ref, curr_ref,
    # VMEM params (full, constant index_map)
    c_ref,                           # (TOKENS+1, D): rows 0..3 folded bias, row 4 = sum
    a1_ref, a2_ref, be2_ref,         # (1, D) affines
    w1_ref, b1_ref, w2_ref, b2_ref,  # channel MLP (w1/w2 bf16, w2 pre-scaled by 1/TOKENS)
    # output (blocked over rows)
    out_ref,
    # scratch: bf16 slab that feeds matmul-1
    y_ref,                           # (TOKENS*bm, D) bf16
    *, gelu_bf16,
):
    M = out_ref.shape[0]
    prev = prev_ref[...]
    curr = curr_ref[...]
    prod = prev * curr

    shp = prev.shape
    a1 = jnp.broadcast_to(a1_ref[...], shp)      # hoisted broadcasts (no CSE in JAX)
    a2 = jnp.broadcast_to(a2_ref[...], shp)
    be2 = jnp.broadcast_to(be2_ref[...], shp)

    # Residual path summed over the 4 tokens, closed form:
    #   sum_i tokens[i] = 2*curr + prod
    #   sum_i mixed[i]  = csum + alpha1 * (S0*prev + S1*curr + S2*prod)
    xsum = (2.0 * curr + prod
            + jnp.broadcast_to(c_ref[TOKENS:TOKENS + 1, :], shp)
            + a1 * (wc_ref[TOKENS, 0] * prev
                    + wc_ref[TOKENS, 1] * curr
                    + wc_ref[TOKENS, 2] * prod))

    # Build the (4*bm, D) matmul-1 input directly into the bf16 scratch slab,
    # one token at a time (per-token x_i buffers die immediately).
    tokens = (prev, curr, prod, curr - prev)
    for i in range(TOKENS):
        lin = wc_ref[i, 0] * prev + wc_ref[i, 1] * curr + wc_ref[i, 2] * prod
        xi = tokens[i] + c_ref[i:i + 1, :] + a1 * lin          # residual 1
        y_ref[i * M:(i + 1) * M, :] = (xi * a2 + be2).astype(jnp.bfloat16)

    # Fused channel MLP over all 4 tokens as one (4*bm, D) x (D, H) matmul.
    h_pre = jnp.dot(y_ref[...], w1_ref[...],
                    preferred_element_type=jnp.float32) + b1_ref[...]
    if gelu_bf16:
        h = jax.nn.gelu(h_pre.astype(jnp.bfloat16))            # v6e/v7x: bf16 VPU/EUP
    else:
        h = jax.nn.gelu(h_pre)                                 # v5e: keep f32
    # Only the token-sum of z is ever needed -> sum h BEFORE matmul-2.
    hsum = ((h[0 * M:1 * M] + h[1 * M:2 * M])
            + (h[2 * M:3 * M] + h[3 * M:4 * M])).astype(jnp.bfloat16)

    # w2 already carries the 1/TOKENS mean factor; b2 multiplicity works out
    # to exactly one b2 (4 * b2 / 4).
    z = jnp.dot(hsum, w2_ref[...], preferred_element_type=jnp.float32) + b2_ref[...]
    out_ref[...] = (1.0 / TOKENS) * xsum + z


# ------------------------------ wrapper -------------------------------------
def params_transfer(prev, curr, params, *, block_rows=None, gelu_bf16=None):
    """prev, curr: (N, D) float32 -> (N, D) float32."""
    N, D = prev.shape
    H = params["w1"].shape[1]

    kind = _device_kind()
    is_old = any(v in kind for v in ("v2", "v3", "v4", "v5"))
    is_v7 = ("v7" in kind) or ("tpu7" in kind)
    if gelu_bf16 is None:
        # bf16 GELU only where the VPU/EUP are bf16-capable; f32 elsewhere.
        gelu_bf16 = ("v6" in kind) or is_v7
    if block_rows is None:
        block_rows = 512 if is_old else 1024

    # Row tile: multiple of 16 so the bf16 scratch stores stay tile-aligned.
    # No padding of the tables: the tail block (if any) is masked by Pallas.
    bm = min(_round_up(block_rows, 16), _round_up(N, 16))
    if pl.cdiv(N, bm) < 2 and N > 16:
        bm = _round_up(pl.cdiv(N, 2), 16)   # keep both v7x TensorCores busy
    grid = pl.cdiv(N, bm)

    # Fold token-mix Linear(4,4) with affine1 in the wrapper:
    #   mixed[i] = c[i] + alpha1*((w[i,0]-w[i,3])*prev + (w[i,1]+w[i,3])*curr + w[i,2]*prod)
    w_tok = params["w_tok"].astype(jnp.float32)
    b_tok = params["b_tok"].astype(jnp.float32)
    beta1 = params["beta1"].astype(jnp.float32)
    wc4 = jnp.stack([w_tok[:, 0] - w_tok[:, 3],
                     w_tok[:, 1] + w_tok[:, 3],
                     w_tok[:, 2]], axis=1)                                  # (4, 3)
    wc = jnp.concatenate([wc4, jnp.sum(wc4, axis=0, keepdims=True)], 0)     # (5, 3)
    c4 = b_tok[:, None] + jnp.sum(w_tok, axis=1, keepdims=True) * beta1     # (4, D)
    c = jnp.concatenate([c4, jnp.sum(c4, axis=0, keepdims=True)], 0)        # (5, D)

    # bf16 MXU operands; fold the 1/TOKENS mean into w2 (power of two -> exact).
    w1 = params["w1"].astype(jnp.bfloat16)
    w2 = (params["w2"] * (1.0 / TOKENS)).astype(jnp.bfloat16)

    row_spec = pl.BlockSpec((bm, D), lambda i: (i, 0))
    full = lambda shape: pl.BlockSpec(shape, lambda i: (0, 0))
    smem = pl.BlockSpec(memory_space=pltpu.SMEM)

    # Rough VMEM budget, clamped per-chip (v7x has 64 MiB physical -> <=48 MiB).
    est = (3 * 2 * bm * D * 4                     # prev/curr/out, double-buffered
           + TOKENS * bm * D * 2                  # bf16 matmul-1 scratch slab
           + 2 * TOKENS * bm * H * 4              # h + GELU temporaries (f32 worst case)
           + 2 * (D * H * 2 + H * D * 2           # w1/w2 bf16, double-buffered
                  + (TOKENS + 1 + 3 + 1) * D * 4 + H * 4))
    cap = (48 << 20) if is_v7 else (100 << 20)
    vmem_limit = int(min(max(2 * est, 32 << 20), cap))

    kernel = functools.partial(_params_transfer_kernel, gelu_bf16=gelu_bf16)

    out = pl.pallas_call(
        kernel,
        out_shape=jax.ShapeDtypeStruct((N, D), jnp.float32),
        grid_spec=pltpu.PrefetchScalarGridSpec(
            num_scalar_prefetch=0,
            grid=(grid,),
            in_specs=[
                smem,                                        # wc  (SMEM)
                row_spec, row_spec,                          # prev, curr
                full((TOKENS + 1, D)),                       # c (folded bias + sum row)
                full((1, D)), full((1, D)), full((1, D)),    # alpha1, alpha2, beta2
                full((D, H)), full((1, H)),                  # w1 (bf16), b1
                full((H, D)), full((1, D)),                  # w2 (bf16, /4), b2
            ],
            out_specs=row_spec,
            scratch_shapes=[pltpu.VMEM((TOKENS * bm, D), jnp.bfloat16)],
        ),
        compiler_params=pltpu.CompilerParams(
            dimension_semantics=("parallel",),
            vmem_limit_bytes=vmem_limit),
    )(
        wc, prev, curr, c,
        params["alpha1"], params["alpha2"], params["beta2"],
        w1, params["b1"], w2, params["b2"],
    )
    return out


def init_params_transfer(key, dim):
    hidden = MLP_RATIO * dim
    ks = jax.random.split(key, 6)
    f32 = jnp.float32
    return {
        "alpha1": jnp.ones((1, dim), f32),
        "beta1":  jnp.zeros((1, dim), f32),
        "w_tok":  0.5 * jax.random.normal(ks[0], (TOKENS, TOKENS), f32),
        "b_tok":  0.1 * jax.random.normal(ks[1], (TOKENS,), f32),
        "alpha2": jnp.ones((1, dim), f32),
        "beta2":  jnp.zeros((1, dim), f32),
        "w1": jax.random.normal(ks[2], (dim, hidden), f32) / jnp.sqrt(f32(dim)),
        "b1": 0.02 * jax.random.normal(ks[3], (1, hidden), f32),
        "w2": jax.random.normal(ks[4], (hidden, dim), f32) / jnp.sqrt(f32(hidden)),
        "b2": 0.02 * jax.random.normal(ks[5], (1, dim), f32),
    }


class EmbeddingMLPTransfer:
    """Three independent ParamsTransfer blocks selected by a python string."""

    def __init__(self, dim, key):
        ku, ki, kt = jax.random.split(key, 3)
        self.params = {
            "user": init_params_transfer(ku, dim),
            "item": init_params_transfer(ki, dim),
            "time": init_params_transfer(kt, dim),
        }

    def __call__(self, prev_weight, curr_weight, select):
        # `select` is a compile-time python string (mirrors the torch if/elif)
        return params_transfer(prev_weight, curr_weight, self.params[select])


# ------------------------ pure-JAX reference (check) -------------------------
def _reference(prev, curr, p):
    x = jnp.stack([prev, curr, curr * prev, curr - prev], axis=1)  # (N, 4, D)
    aff1 = x * p["alpha1"][None] + p["beta1"][None]
    mixed = jnp.einsum("ij,njd->nid", p["w_tok"], aff1) + p["b_tok"][None, :, None]
    x = x + mixed
    y = x * p["alpha2"][None] + p["beta2"][None]
    h = jax.nn.gelu(jnp.einsum("nid,dh->nih", y, p["w1"]) + p["b1"][None])
    z = jnp.einsum("nih,hd->nid", h, p["w2"]) + p["b2"][None]
    x = x + z
    return x.mean(axis=1)


if __name__ == "__main__":
    key = jax.random.PRNGKey(0)
    k_model, k_prev, k_curr = jax.random.split(key, 3)

    N, D = 32, 128  # 32 embedding rows, embedding dim 128 (gives a 2-step grid)
    model = EmbeddingMLPTransfer(D, k_model)

    prev_weight = jax.random.normal(k_prev, (N, D), jnp.float32)
    curr_weight = jax.random.normal(k_curr, (N, D), jnp.float32)

    out = model(prev_weight, curr_weight, "user")
    out = jax.block_until_ready(out)

    ref = _reference(prev_weight, curr_weight, model.params["user"])
    assert out.shape == (N, D)
    # bf16 MXU operands (and bf16 GELU on v6e/v7x) -> looser tolerance than f32
    assert jnp.allclose(out, ref, atol=5e-2, rtol=5e-2)

    print("KERNEL_OK")
</pallas_src>

<mosaic_0001>
module attributes {stable_mosaic.version = 11 : i64} {
  func.func @_params_transfer_kernel(%arg0: i32, %arg1: memref<5x3xf32, #tpu.memory_space<smem>>, %arg2: memref<16x128xf32, #tpu.memory_space<vmem>>, %arg3: memref<16x128xf32, #tpu.memory_space<vmem>>, %arg4: memref<5x128xf32, #tpu.memory_space<vmem>>, %arg5: memref<1x128xf32, #tpu.memory_space<vmem>>, %arg6: memref<1x128xf32, #tpu.memory_space<vmem>>, %arg7: memref<1x128xf32, #tpu.memory_space<vmem>>, %arg8: memref<128x512xbf16, #tpu.memory_space<vmem>>, %arg9: memref<1x512xf32, #tpu.memory_space<vmem>>, %arg10: memref<512x128xbf16, #tpu.memory_space<vmem>>, %arg11: memref<1x128xf32, #tpu.memory_space<vmem>>, %arg12: memref<16x128xf32, #tpu.memory_space<vmem>>, %arg13: memref<64x128xbf16, #tpu.memory_space<vmem>>) attributes {dimension_semantics = [#tpu.dimension_semantics<parallel>], iteration_bounds = array<i64: 2>, scalar_prefetch = 0 : i64, scratch_operands = 1 : i64, tpu.core_type = #tpu.core_type<tc>, window_params = [{transform_indices = @transform_0, window_bounds = array<i64: 5, 3>}, {transform_indices = @transform_1, window_bounds = array<i64: 16, 128>}, {transform_indices = @transform_2, window_bounds = array<i64: 16, 128>}, {pipeline_mode = #tpu.pipeline_mode<synchronous>, transform_indices = @transform_3, window_bounds = array<i64: 5, 128>}, {pipeline_mode = #tpu.pipeline_mode<synchronous>, transform_indices = @transform_4, window_bounds = array<i64: 1, 128>}, {pipeline_mode = #tpu.pipeline_mode<synchronous>, transform_indices = @transform_5, window_bounds = array<i64: 1, 128>}, {pipeline_mode = #tpu.pipeline_mode<synchronous>, transform_indices = @transform_6, window_bounds = array<i64: 1, 128>}, {pipeline_mode = #tpu.pipeline_mode<synchronous>, transform_indices = @transform_7, window_bounds = array<i64: 128, 512>}, {pipeline_mode = #tpu.pipeline_mode<synchronous>, transform_indices = @transform_8, window_bounds = array<i64: 1, 512>}, {pipeline_mode = #tpu.pipeline_mode<synchronous>, transform_indices = @transform_9, window_bounds = array<i64: 512, 128>}, {pipeline_mode = #tpu.pipeline_mode<synchronous>, transform_indices = @transform_10, window_bounds = array<i64: 1, 128>}, {transform_indices = @transform_11, window_bounds = array<i64: 16, 128>}]} {
    %c0 = arith.constant 0 : index
    %c0_0 = arith.constant 0 : index
    %0 = vector.load %arg2[%c0, %c0_0] : memref<16x128xf32, #tpu.memory_space<vmem>>, vector<16x128xf32>
    %c0_1 = arith.constant 0 : index
    %c0_2 = arith.constant 0 : index
    %1 = vector.load %arg3[%c0_1, %c0_2] : memref<16x128xf32, #tpu.memory_space<vmem>>, vector<16x128xf32>
    %2 = arith.mulf %0, %1 : vector<16x128xf32>
    %c0_3 = arith.constant 0 : index
    %c0_4 = arith.constant 0 : index
    %3 = vector.load %arg5[%c0_3, %c0_4] : memref<1x128xf32, #tpu.memory_space<vmem>>, vector<1x128xf32>
    %4 = vector.shape_cast %3 : vector<1x128xf32> to vector<1x128xf32>
    %5 = vector.broadcast %4 : vector<1x128xf32> to vector<16x128xf32>
    %c0_5 = arith.constant 0 : index
    %c0_6 = arith.constant 0 : index
    %6 = vector.load %arg6[%c0_5, %c0_6] : memref<1x128xf32, #tpu.memory_space<vmem>>, vector<1x128xf32>
    %7 = vector.shape_cast %6 : vector<1x128xf32> to vector<1x128xf32>
    %8 = vector.broadcast %7 : vector<1x128xf32> to vector<16x128xf32>
    %c0_7 = arith.constant 0 : index
    %c0_8 = arith.constant 0 : index
    %9 = vector.load %arg7[%c0_7, %c0_8] : memref<1x128xf32, #tpu.memory_space<vmem>>, vector<1x128xf32>
    %10 = vector.shape_cast %9 : vector<1x128xf32> to vector<1x128xf32>
    %11 = vector.broadcast %10 : vector<1x128xf32> to vector<16x128xf32>
    %cst = arith.constant 2.000000e+00 : f32
    %12 = vector.broadcast %cst : f32 to vector<16x128xf32>
    %13 = arith.mulf %12, %1 : vector<16x128xf32>
    %14 = arith.addf %13, %2 : vector<16x128xf32>
    %c4 = arith.constant 4 : index
    %c0_9 = arith.constant 0 : index
    %15 = vector.load %arg4[%c4, %c0_9] : memref<5x128xf32, #tpu.memory_space<vmem>>, vector<1x128xf32>
    %16 = vector.shape_cast %15 : vector<1x128xf32> to vector<1x128xf32>
    %17 = vector.broadcast %16 : vector<1x128xf32> to vector<16x128xf32>
    %18 = arith.addf %14, %17 : vector<16x128xf32>
    %c4_10 = arith.constant 4 : index
    %c0_11 = arith.constant 0 : index
    %19 = memref.load %arg1[%c4_10, %c0_11] : memref<5x3xf32, #tpu.memory_space<smem>>
    %20 = vector.broadcast %19 : f32 to vector<16x128xf32>
    %21 = arith.mulf %20, %0 : vector<16x128xf32>
    %c4_12 = arith.constant 4 : index
    %c1 = arith.constant 1 : index
    %22 = memref.load %arg1[%c4_12, %c1] : memref<5x3xf32, #tpu.memory_space<smem>>
    %23 = vector.broadcast %22 : f32 to vector<16x128xf32>
    %24 = arith.mulf %23, %1 : vector<16x128xf32>
    %25 = arith.addf %21, %24 : vector<16x128xf32>
    %c4_13 = arith.constant 4 : index
    %c2 = arith.constant 2 : index
    %26 = memref.load %arg1[%c4_13, %c2] : memref<5x3xf32, #tpu.memory_space<smem>>
    %27 = vector.broadcast %26 : f32 to vector<16x128xf32>
    %28 = arith.mulf %27, %2 : vector<16x128xf32>
    %29 = arith.addf %25, %28 : vector<16x128xf32>
    %30 = arith.mulf %5, %29 : vector<16x128xf32>
    %31 = arith.addf %18, %30 : vector<16x128xf32>
    %32 = arith.subf %1, %0 : vector<16x128xf32>
    %c0_14 = arith.constant 0 : index
    %c0_15 = arith.constant 0 : index
    %33 = memref.load %arg1[%c0_14, %c0_15] : memref<5x3xf32, #tpu.memory_space<smem>>
    %34 = vector.broadcast %33 : f32 to vector<16x128xf32>
    %35 = arith.mulf %34, %0 : vector<16x128xf32>
    %c0_16 = arith.constant 0 : index
    %c1_17 = arith.constant 1 : index
    %36 = memref.load %arg1[%c0_16, %c1_17] : memref<5x3xf32, #tpu.memory_space<smem>>
    %37 = vector.broadcast %36 : f32 to vector<16x128xf32>
    %38 = arith.mulf %37, %1 : vector<16x128xf32>
    %39 = arith.addf %35, %38 : vector<16x128xf32>
    %c0_18 = arith.constant 0 : index
    %c2_19 = arith.constant 2 : index
    %40 = memref.load %arg1[%c0_18, %c2_19] : memref<5x3xf32, #tpu.memory_space<smem>>
    %41 = vector.broadcast %40 : f32 to vector<16x128xf32>
    %42 = arith.mulf %41, %2 : vector<16x128xf32>
    %43 = arith.addf %39, %42 : vector<16x128xf32>
    %c0_20 = arith.constant 0 : index
    %c0_21 = arith.constant 0 : index
    %44 = vector.load %arg4[%c0_20, %c0_21] : memref<5x128xf32, #tpu.memory_space<vmem>>, vector<1x128xf32>
    %45 = vector.broadcast %44 : vector<1x128xf32> to vector<16x128xf32>
    %46 = arith.addf %0, %45 : vector<16x128xf32>
    %47 = arith.mulf %5, %43 : vector<16x128xf32>
    %48 = arith.addf %46, %47 : vector<16x128xf32>
    %49 = arith.mulf %48, %8 : vector<16x128xf32>
    %50 = arith.addf %49, %11 : vector<16x128xf32>
    %51 = arith.truncf %50 : vector<16x128xf32> to vector<16x128xbf16>
    %c0_22 = arith.constant 0 : index
    %c0_23 = arith.constant 0 : index
    %52 = vector.load %arg13[%c0_22, %c0_23] : memref<64x128xbf16, #tpu.memory_space<vmem>>, vector<16x128xbf16>
    tpu.vector_store %arg13[%c0_22, %c0_23], %51 {strides = array<i32>} : memref<64x128xbf16, #tpu.memory_space<vmem>>, vector<16x128xbf16>,
    %c1_24 = arith.constant 1 : index
    %c0_25 = arith.constant 0 : index
    %53 = memref.load %arg1[%c1_24, %c0_25] : memref<5x3xf32, #tpu.memory_space<smem>>
    %54 = vector.broadcast %53 : f32 to vector<16x128xf32>
    %55 = arith.mulf %54, %0 : vector<16x128xf32>
    %c1_26 = arith.constant 1 : index
    %c1_27 = arith.constant 1 : index
    %56 = memref.load %arg1[%c1_26, %c1_27] : memref<5x3xf32, #tpu.memory_space<smem>>
    %57 = vector.broadcast %56 : f32 to vector<16x128xf32>
    %58 = arith.mulf %57, %1 : vector<16x128xf32>
    %59 = arith.addf %55, %58 : vector<16x128xf32>
    %c1_28 = arith.constant 1 : index
    %c2_29 = arith.constant 2 : index
    %60 = memref.load %arg1[%c1_28, %c2_29] : memref<5x3xf32, #tpu.memory_space<smem>>
    %61 = vector.broadcast %60 : f32 to vector<16x128xf32>
    %62 = arith.mulf %61, %2 : vector<16x128xf32>
    %63 = arith.addf %59, %62 : vector<16x128xf32>
    %c1_30 = arith.constant 1 : index
    %c0_31 = arith.constant 0 : index
    %64 = vector.load %arg4[%c1_30, %c0_31] : memref<5x128xf32, #tpu.memory_space<vmem>>, vector<1x128xf32>
    %65 = vector.broadcast %64 : vector<1x128xf32> to vector<16x128xf32>
    %66 = arith.addf %1, %65 : vector<16x128xf32>
    %67 = arith.mulf %5, %63 : vector<16x128xf32>
    %68 = arith.addf %66, %67 : vector<16x128xf32>
    %69 = arith.mulf %68, %8 : vector<16x128xf32>
    %70 = arith.addf %69, %11 : vector<16x128xf32>
    %71 = arith.truncf %70 : vector<16x128xf32> to vector<16x128xbf16>
    %c16 = arith.constant 16 : index
    %c0_32 = arith.constant 0 : index
    %72 = vector.load %arg13[%c16, %c0_32] : memref<64x128xbf16, #tpu.memory_space<vmem>>, vector<16x128xbf16>
    tpu.vector_store %arg13[%c16, %c0_32], %71 {strides = array<i32>} : memref<64x128xbf16, #tpu.memory_space<vmem>>, vector<16x128xbf16>,
    %c2_33 = arith.constant 2 : index
    %c0_34 = arith.constant 0 : index
    %73 = memref.load %arg1[%c2_33, %c0_34] : memref<5x3xf32, #tpu.memory_space<smem>>
    %74 = vector.broadcast %73 : f32 to vector<16x128xf32>
    %75 = arith.mulf %74, %0 : vector<16x128xf32>
    %c2_35 = arith.constant 2 : index
    %c1_36 = arith.constant 1 : index
    %76 = memref.load %arg1[%c2_35, %c1_36] : memref<5x3xf32, #tpu.memory_space<smem>>
    %77 = vector.broadcast %76 : f32 to vector<16x128xf32>
    %78 = arith.mulf %77, %1 : vector<16x128xf32>
    %79 = arith.addf %75, %78 : vector<16x128xf32>
    %c2_37 = arith.constant 2 : index
    %c2_38 = arith.constant 2 : index
    %80 = memref.load %arg1[%c2_37, %c2_38] : memref<5x3xf32, #tpu.memory_space<smem>>
    %81 = vector.broadcast %80 : f32 to vector<16x128xf32>
    %82 = arith.mulf %81, %2 : vector<16x128xf32>
    %83 = arith.addf %79, %82 : vector<16x128xf32>
    %c2_39 = arith.constant 2 : index
    %c0_40 = arith.constant 0 : index
    %84 = vector.load %arg4[%c2_39, %c0_40] : memref<5x128xf32, #tpu.memory_space<vmem>>, vector<1x128xf32>
    %85 = vector.broadcast %84 : vector<1x128xf32> to vector<16x128xf32>
    %86 = arith.addf %2, %85 : vector<16x128xf32>
    %87 = arith.mulf %5, %83 : vector<16x128xf32>
    %88 = arith.addf %86, %87 : vector<16x128xf32>
    %89 = arith.mulf %88, %8 : vector<16x128xf32>
    %90 = arith.addf %89, %11 : vector<16x128xf32>
    %91 = arith.truncf %90 : vector<16x128xf32> to vector<16x128xbf16>
    %c32 = arith.constant 32 : index
    %c0_41 = arith.constant 0 : index
    %92 = vector.load %arg13[%c32, %c0_41] : memref<64x128xbf16, #tpu.memory_space<vmem>>, vector<16x128xbf16>
    tpu.vector_store %arg13[%c32, %c0_41], %91 {strides = array<i32>} : memref<64x128xbf16, #tpu.memory_space<vmem>>, vector<16x128xbf16>,
    %c3 = arith.constant 3 : index
    %c0_42 = arith.constant 0 : index
    %93 = memref.load %arg1[%c3, %c0_42] : memref<5x3xf32, #tpu.memory_space<smem>>
    %94 = vector.broadcast %93 : f32 to vector<16x128xf32>
    %95 = arith.mulf %94, %0 : vector<16x128xf32>
    %c3_43 = arith.constant 3 : index
    %c1_44 = arith.constant 1 : index
    %96 = memref.load %arg1[%c3_43, %c1_44] : memref<5x3xf32, #tpu.memory_space<smem>>
    %97 = vector.broadcast %96 : f32 to vector<16x128xf32>
    %98 = arith.mulf %97, %1 : vector<16x128xf32>
    %99 = arith.addf %95, %98 : vector<16x128xf32>
    %c3_45 = arith.constant 3 : index
    %c2_46 = arith.constant 2 : index
    %100 = memref.load %arg1[%c3_45, %c2_46] : memref<5x3xf32, #tpu.memory_space<smem>>
    %101 = vector.broadcast %100 : f32 to vector<16x128xf32>
    %102 = arith.mulf %101, %2 : vector<16x128xf32>
    %103 = arith.addf %99, %102 : vector<16x128xf32>
    %c3_47 = arith.constant 3 : index
    %c0_48 = arith.constant 0 : index
    %104 = vector.load %arg4[%c3_47, %c0_48] : memref<5x128xf32, #tpu.memory_space<vmem>>, vector<1x128xf32>
    %105 = vector.broadcast %104 : vector<1x128xf32> to vector<16x128xf32>
    %106 = arith.addf %32, %105 : vector<16x128xf32>
    %107 = arith.mulf %5, %103 : vector<16x128xf32>
    %108 = arith.addf %106, %107 : vector<16x128xf32>
    %109 = arith.mulf %108, %8 : vector<16x128xf32>
    %110 = arith.addf %109, %11 : vector<16x128xf32>
    %111 = arith.truncf %110 : vector<16x128xf32> to vector<16x128xbf16>
    %c48 = arith.constant 48 : index
    %c0_49 = arith.constant 0 : index
    %112 = vector.load %arg13[%c48, %c0_49] : memref<64x128xbf16, #tpu.memory_space<vmem>>, vector<16x128xbf16>
    tpu.vector_store %arg13[%c48, %c0_49], %111 {strides = array<i32>} : memref<64x128xbf16, #tpu.memory_space<vmem>>, vector<16x128xbf16>,
    %c0_50 = arith.constant 0 : index
    %c0_51 = arith.constant 0 : index
    %113 = vector.load %arg13[%c0_50, %c0_51] : memref<64x128xbf16, #tpu.memory_space<vmem>>, vector<64x128xbf16>
    %c0_52 = arith.constant 0 : index
    %c0_53 = arith.constant 0 : index
    %114 = vector.load %arg8[%c0_52, %c0_53] : memref<128x512xbf16, #tpu.memory_space<vmem>>, vector<128x512xbf16>
    %cst_54 = arith.constant dense<0.000000e+00> : vector<64x512xf32>
    %115 = tpu.matmul %113, %114, %cst_54 {dimension_numbers = #tpu.dot_dimension_numbers<[1], [0], [0], [1], [0, 0, 1, 1], [], []>} : vector<64x128xbf16>, vector<128x512xbf16>, vector<64x512xf32> -> vector<64x512xf32>
    %c0_55 = arith.constant 0 : index
    %c0_56 = arith.constant 0 : index
    %116 = vector.load %arg9[%c0_55, %c0_56] : memref<1x512xf32, #tpu.memory_space<vmem>>, vector<1x512xf32>
    %117 = vector.broadcast %116 : vector<1x512xf32> to vector<64x512xf32>
    %118 = arith.addf %115, %117 : vector<64x512xf32>
    %119 = arith.mulf %118, %118 : vector<64x512xf32>
    %120 = arith.mulf %118, %119 : vector<64x512xf32>
    %cst_57 = arith.constant 4.471500e-02 : f32
    %121 = vector.broadcast %cst_57 : f32 to vector<64x512xf32>
    %122 = arith.mulf %121, %120 : vector<64x512xf32>
    %123 = arith.addf %118, %122 : vector<64x512xf32>
    %cst_58 = arith.constant 0.797884583 : f32
    %124 = vector.broadcast %cst_58 : f32 to vector<64x512xf32>
    %125 = arith.mulf %124, %123 : vector<64x512xf32>
    %126 = math.tanh %125 : vector<64x512xf32>
    %cst_59 = arith.constant 1.000000e+00 : f32
    %127 = vector.broadcast %cst_59 : f32 to vector<64x512xf32>
    %128 = arith.addf %127, %126 : vector<64x512xf32>
    %cst_60 = arith.constant 5.000000e-01 : f32
    %129 = vector.broadcast %cst_60 : f32 to vector<64x512xf32>
    %130 = arith.mulf %129, %128 : vector<64x512xf32>
    %131 = arith.mulf %118, %130 : vector<64x512xf32>
    %132 = vector.extract_strided_slice %131 {offsets = [0, 0], sizes = [16, 512], strides = [1, 1]} : vector<64x512xf32> to vector<16x512xf32>
    %133 = vector.extract_strided_slice %131 {offsets = [16, 0], sizes = [16, 512], strides = [1, 1]} : vector<64x512xf32> to vector<16x512xf32>
    %134 = arith.addf %132, %133 : vector<16x512xf32>
    %135 = vector.extract_strided_slice %131 {offsets = [32, 0], sizes = [16, 512], strides = [1, 1]} : vector<64x512xf32> to vector<16x512xf32>
    %136 = vector.extract_strided_slice %131 {offsets = [48, 0], sizes = [16, 512], strides = [1, 1]} : vector<64x512xf32> to vector<16x512xf32>
    %137 = arith.addf %135, %136 : vector<16x512xf32>
    %138 = arith.addf %134, %137 : vector<16x512xf32>
    %139 = arith.truncf %138 : vector<16x512xf32> to vector<16x512xbf16>
    %c0_61 = arith.constant 0 : index
    %c0_62 = arith.constant 0 : index
    %140 = vector.load %arg10[%c0_61, %c0_62] : memref<512x128xbf16, #tpu.memory_space<vmem>>, vector<512x128xbf16>
    %cst_63 = arith.constant dense<0.000000e+00> : vector<16x128xf32>
    %141 = tpu.matmul %139, %140, %cst_63 {dimension_numbers = #tpu.dot_dimension_numbers<[1], [0], [0], [1], [0, 0, 1, 1], [], []>} : vector<16x512xbf16>, vector<512x128xbf16>, vector<16x128xf32> -> vector<16x128xf32>
    %c0_64 = arith.constant 0 : index
    %c0_65 = arith.constant 0 : index
    %142 = vector.load %arg11[%c0_64, %c0_65] : memref<1x128xf32, #tpu.memory_space<vmem>>, vector<1x128xf32>
    %143 = vector.broadcast %142 : vector<1x128xf32> to vector<16x128xf32>
    %144 = arith.addf %141, %143 : vector<16x128xf32>
    %cst_66 = arith.constant 2.500000e-01 : f32
    %145 = vector.broadcast %cst_66 : f32 to vector<16x128xf32>
    %146 = arith.mulf %145, %31 : vector<16x128xf32>
    %147 = arith.addf %146, %144 : vector<16x128xf32>
    %c0_67 = arith.constant 0 : index
    %c0_68 = arith.constant 0 : index
    %148 = vector.load %arg12[%c0_67, %c0_68] : memref<16x128xf32, #tpu.memory_space<vmem>>, vector<16x128xf32>
    tpu.vector_store %arg12[%c0_67, %c0_68], %147 {strides = array<i32>} : memref<16x128xf32, #tpu.memory_space<vmem>>, vector<16x128xf32>,
    return
  }
  func.func @transform_0(%arg0: i32) -> (i32, i32) {
    %c0_i32 = arith.constant 0 : i32
    %c0_i32_0 = arith.constant 0 : i32
    %c0_i32_1 = arith.constant 0 : i32
    return %c0_i32, %c0_i32_0 : i32, i32
  }
  func.func @transform_1(%arg0: i32) -> (i32, i32) {
    %c0_i32 = arith.constant 0 : i32
    %c0_i32_0 = arith.constant 0 : i32
    return %arg0, %c0_i32 : i32, i32
  }
  func.func @transform_2(%arg0: i32) -> (i32, i32) {
    %c0_i32 = arith.constant 0 : i32
    %c0_i32_0 = arith.constant 0 : i32
    return %arg0, %c0_i32 : i32, i32
  }
  func.func @transform_3(%arg0: i32) -> (i32, i32) {
    %c0_i32 = arith.constant 0 : i32
    %c0_i32_0 = arith.constant 0 : i32
    %c0_i32_1 = arith.constant 0 : i32
    return %c0_i32, %c0_i32_0 : i32, i32
  }
  func.func @transform_4(%arg0: i32) -> (i32, i32) {
    %c0_i32 = arith.constant 0 : i32
    %c0_i32_0 = arith.constant 0 : i32
    %c0_i32_1 = arith.constant 0 : i32
    return %c0_i32, %c0_i32_0 : i32, i32
  }
  func.func @transform_5(%arg0: i32) -> (i32, i32) {
    %c0_i32 = arith.constant 0 : i32
    %c0_i32_0 = arith.constant 0 : i32
    %c0_i32_1 = arith.constant 0 : i32
    return %c0_i32, %c0_i32_0 : i32, i32
  }
  func.func @transform_6(%arg0: i32) -> (i32, i32) {
    %c0_i32 = arith.constant 0 : i32
    %c0_i32_0 = arith.constant 0 : i32
    %c0_i32_1 = arith.constant 0 : i32
    return %c0_i32, %c0_i32_0 : i32, i32
  }
  func.func @transform_7(%arg0: i32) -> (i32, i32) {
    %c0_i32 = arith.constant 0 : i32
    %c0_i32_0 = arith.constant 0 : i32
    %c0_i32_1 = arith.constant 0 : i32
    return %c0_i32, %c0_i32_0 : i32, i32
  }
  func.func @transform_8(%arg0: i32) -> (i32, i32) {
    %c0_i32 = arith.constant 0 : i32
    %c0_i32_0 = arith.constant 0 : i32
    %c0_i32_1 = arith.constant 0 : i32
    return %c0_i32, %c0_i32_0 : i32, i32
  }
  func.func @transform_9(%arg0: i32) -> (i32, i32) {
    %c0_i32 = arith.constant 0 : i32
    %c0_i32_0 = arith.constant 0 : i32
    %c0_i32_1 = arith.constant 0 : i32
    return %c0_i32, %c0_i32_0 : i32, i32
  }
  func.func @transform_10(%arg0: i32) -> (i32, i32) {
    %c0_i32 = arith.constant 0 : i32
    %c0_i32_0 = arith.constant 0 : i32
    %c0_i32_1 = arith.constant 0 : i32
    return %c0_i32, %c0_i32_0 : i32, i32
  }
  func.func @transform_11(%arg0: i32) -> (i32, i32) {
    %c0_i32 = arith.constant 0 : i32
    %c0_i32_0 = arith.constant 0 : i32
    return %arg0, %c0_i32 : i32, i32
  }
}

</mosaic_0001>

<llo_original>
// kernel: tpu_custom_call.1
$region0: #{tpu_custom_call.1}
  #allocation0 [shape = 'u32[]', space=smem, size = 0x4, offset = 0x4, fixed_abs, tag = 'smem constant byte address 0x4 - core index']
  #allocation1 [shape = 'u32[144,128]{1,0:T(1,128)}', space=vmem, size = 0x12000, scoped, tag = 'internal scratch']
  #allocation2 [shape = 'bf16[64,128]{1,0:T(16,128)(2,1)}', space=vmem, size = 0x4000, scoped, tag = 'scratch operand']
  %s0 = inlined_call_operand.vmem [shape: f32[5,3], index: 0, kind: input, shape index: {}]
  %s1 = inlined_call_operand.hbm [shape: f32[32,128], index: 1, kind: input, shape index: {}]
  %s2 = inlined_call_operand.hbm [shape: f32[32,128], index: 2, kind: input, shape index: {}]
  %s3 = inlined_call_operand.vmem [shape: f32[5,128], index: 3, kind: input, shape index: {}]
  %s4 = inlined_call_operand.vmem [shape: f32[1,128], index: 4, kind: input, shape index: {}]
  %s5 = inlined_call_operand.vmem [shape: f32[1,128], index: 5, kind: input, shape index: {}]
  %s6 = inlined_call_operand.vmem [shape: f32[1,128], index: 6, kind: input, shape index: {}]
  %s7 = inlined_call_operand.hbm [shape: bf16[128,512], index: 7, kind: input, shape index: {}]
  %s8 = inlined_call_operand.vmem [shape: f32[1,512], index: 8, kind: input, shape index: {}]
  %s9 = inlined_call_operand.hbm [shape: bf16[512,128], index: 9, kind: input, shape index: {}]
  %s10 = inlined_call_operand.vmem [shape: f32[1,128], index: 10, kind: input, shape index: {}]
  %s11 = inlined_call_operand.hbm [shape: f32[32,128], index: 11, kind: output, shape index: {}]
  %s12 = sld [smem:[#allocation0]]
  $region97: #{tpu_custom_call.1} parent=0
    _
  %s14 = ssub.s32 1, %s12
  %s15 = scalar_select 0, %s14, %s12
  $region1: #{tpu_custom_call.1} parent=0
    #allocation3 [shape = 'u8[4096]{0}', space=smem, size = 0x1000, scoped, tag = 'input window, operand 0, single buffered']
    #allocation4 [shape = 's32[2]{0}', space=sflag, size = 0x8, scoped, tag = 'scoped memory for tpu_custom_call.1']
    #allocation5 [shape = 's32[2]{0}', space=sflag, size = 0x8, scoped, tag = 'scoped memory for tpu_custom_call.1']
    #allocation6 [shape = 's32[2]{0}', space=sflag, size = 0x8, scoped, tag = 'scoped memory for tpu_custom_call.1']
    #allocation7 [shape = 'u8[16384]{0}', space=vmem, size = 0x4000, scoped, tag = 'input window, operand 1']
    #allocation8 [shape = 'u8[16384]{0}', space=vmem, size = 0x4000, scoped, tag = 'input window, operand 2']
    #allocation9 [shape = 's32[2]{0}', space=sflag, size = 0x8, scoped, tag = 'scoped memory for tpu_custom_call.1']
    #allocation10 [shape = 'u8[131072]{0}', space=vmem, size = 0x20000, scoped, tag = 'input window, operand 7, single buffered']
    #allocation11 [shape = 'u8[131072]{0}', space=vmem, size = 0x20000, scoped, tag = 'input window, operand 9, single buffered']
    #allocation12 [shape = 's32[1]{0}', space=sflag, size = 0x4, scoped, tag = 'scoped memory for tpu_custom_call.1']
    #allocation13 [shape = 'u8[16384]{0}', space=vmem, size = 0x4000, scoped, tag = 'output window, operand 0']
    %16 = vsyncpa [#allocation6], 0
    %17 = vsyncpa [#allocation4], 0
    %s18 = scalar_lea.sflag [#allocation4], 1
    %19 = vsyncpa %s18, 0
    %20 = vsyncpa [#allocation9], 0
    %s21 = scalar_lea.sflag [#allocation9], 1
    %22 = vsyncpa %s21, 0
    %23 = vsyncpa [#allocation12], 0
    %24 = vsyncpa [#allocation5], 0
    %s25 = scalar_lea.sflag [#allocation5], 1
    %26 = vsyncpa %s25, 0
    loop: start=0, step=1, limit=4
    $region2: #{tpu_custom_call.1} parent=1 // loop_pre_header
      _
    $region3: #{tpu_custom_call.1} parent=1 // loop_header
      %s28 = sphi 0, %s32
      %p29 = scmp.ge.s32.totalorder %s28, 4
      %s36 = sphi 0, %s36
      %s38 = sphi 0, %s36
      %s39 = sphi 0, %s38
      %s53 = sphi 0, %s39
      %s59 = sphi 0, %s61
      %s62 = sphi 0, %s59
      %s63 = sphi 0, %s62
      %s79 = sphi 0, %s63
      %s85 = sphi 0, %s87
      %s88 = sphi 0, %s85
      %s89 = sphi 0, %s88
      %s105 = sphi 0, %s89
      %s109 = sphi 0, %s109
      %s111 = sphi 0, %s109
      %s112 = sphi 0, %s111
      %s126 = sphi 0, %s112
      %s130 = sphi 0, %s130
      %s132 = sphi 0, %s130
      %s133 = sphi 0, %s132
      %s147 = sphi 0, %s133
      %s151 = sphi 0, %s151
      %s153 = sphi 0, %s151
      %s154 = sphi 0, %s153
      %s168 = sphi 0, %s154
      %s172 = sphi 0, %s172
      %s174 = sphi 0, %s172
      %s175 = sphi 0, %s174
      %s189 = sphi 0, %s175
      %s193 = sphi 0, %s193
      %s195 = sphi 0, %s193
      %s196 = sphi 0, %s195
      %s210 = sphi 0, %s196
      %s214 = sphi 0, %s214
      %s216 = sphi 0, %s214
      %s217 = sphi 0, %s216
      %s231 = sphi 0, %s217
      %s235 = sphi 0, %s235
      %s237 = sphi 0, %s235
      %s238 = sphi 0, %s237
      %s252 = sphi 0, %s238
      %s256 = sphi 0, %s256
      %s258 = sphi 0, %s256
      %s259 = sphi 0, %s258
      %s273 = sphi 0, %s259
      %s279 = sphi 0, %s281
      %s282 = sphi 0, %s279
      %s283 = sphi 0, %s282
      %s299 = sphi 0, %s283
    $region4: #{tpu_custom_call.1} parent=1 // loop_header_branch
      %31 = sbr.rel (%p29) target = $region8
    $region5: #{tpu_custom_call.1} parent=1 // loop_body
      %s33 = ssub.s32 %s28, 1
      %s34 = ssub.s32 %s28, 2
      %s35 = sadd.s32 %s28, 1
      %s37 = sadd.s32 %s36, 1
      %p40 = scmp.eq.s32.totalorder %s28, 1
      %p41 = scmp.ne.s32.totalorder %s36, %s38
      %p42 = scmp.eq.s32.totalorder %s28, 0
      %p43 = por %p41, %p42
      %p44 = scmp.ne.s32.totalorder %s36, %s38
      %p45 = scmp.eq.s32.totalorder %s33, 1
      %p46 = por %p44, %p45
      %p47 = scmp.ne.s32.totalorder %s38, %s39
      %p48 = scmp.eq.s32.totalorder %s33, 0
      %p49 = por %p47, %p48
      %p50 = scmp.ne.s32.totalorder %s38, %s39
      %p51 = scmp.eq.s32.totalorder %s34, 1
      %p52 = por %p50, %p51
      %p54 = scmp.ne.s32.totalorder %s39, %s53
      %p55 = scmp.eq.s32.totalorder %s34, 0
      %p56 = por %p54, %p55
      %s57 = ssub.s32 %s28, %s35
      %p58 = scmp.eq.s32.totalorder %s57, 0
      %s60 = sadd.s32 %s59, 1
      %s61 = scalar_select %p58, %s59, %s60
      %p64 = pneg %p58
      %p65 = scmp.eq.s32.totalorder %s28, 1
      %p66 = por %p64, %p65
      %p67 = scmp.ne.s32.totalorder %s59, %s62
      %p68 = scmp.eq.s32.totalorder %s28, 0
      %p69 = por %p67, %p68
      %p70 = scmp.ne.s32.totalorder %s59, %s62
      %p71 = scmp.eq.s32.totalorder %s33, 1
      %p72 = por %p70, %p71
      %p73 = scmp.ne.s32.totalorder %s62, %s63
      %p74 = scmp.eq.s32.totalorder %s33, 0
      %p75 = por %p73, %p74
      %p76 = scmp.ne.s32.totalorder %s62, %s63
      %p77 = scmp.eq.s32.totalorder %s34, 1
      %p78 = por %p76, %p77
      %p80 = scmp.ne.s32.totalorder %s63, %s79
      %p81 = scmp.eq.s32.totalorder %s34, 0
      %p82 = por %p80, %p81
      %s83 = ssub.s32 %s28, %s35
      %p84 = scmp.eq.s32.totalorder %s83, 0
      %s86 = sadd.s32 %s85, 1
      %s87 = scalar_select %p84, %s85, %s86
      %p90 = pneg %p84
      %p91 = scmp.eq.s32.totalorder %s28, 1
      %p92 = por %p90, %p91
      %p93 = scmp.ne.s32.totalorder %s85, %s88
      %p94 = scmp.eq.s32.totalorder %s28, 0
      %p95 = por %p93, %p94
      %p96 = scmp.ne.s32.totalorder %s85, %s88
      %p97 = scmp.eq.s32.totalorder %s33, 1
      %p98 = por %p96, %p97
      %p99 = scmp.ne.s32.totalorder %s88, %s89
      %p100 = scmp.eq.s32.totalorder %s33, 0
      %p101 = por %p99, %p100
      %p102 = scmp.ne.s32.totalorder %s88, %s89
      %p103 = scmp.eq.s32.totalorder %s34, 1
      %p104 = por %p102, %p103
      %p106 = scmp.ne.s32.totalorder %s89, %s105
      %p107 = scmp.eq.s32.totalorder %s34, 0
      %p108 = por %p106, %p107
      %s110 = sadd.s32 %s109, 1
      %p113 = scmp.eq.s32.totalorder %s28, 1
      %p114 = scmp.ne.s32.totalorder %s109, %s111
      %p115 = scmp.eq.s32.totalorder %s28, 0
      %p116 = por %p114, %p115
      %p117 = scmp.ne.s32.totalorder %s109, %s111
      %p118 = scmp.eq.s32.totalorder %s33, 1
      %p119 = por %p117, %p118
      %p120 = scmp.ne.s32.totalorder %s111, %s112
      %p121 = scmp.eq.s32.totalorder %s33, 0
      %p122 = por %p120, %p121
      %p123 = scmp.ne.s32.totalorder %s111, %s112
      %p124 = scmp.eq.s32.totalorder %s34, 1
      %p125 = por %p123, %p124
      %p127 = scmp.ne.s32.totalorder %s112, %s126
      %p128 = scmp.eq.s32.totalorder %s34, 0
      %p129 = por %p127, %p128
      %s131 = sadd.s32 %s130, 1
      %p134 = scmp.eq.s32.totalorder %s28, 1
      %p135 = scmp.ne.s32.totalorder %s130, %s132
      %p136 = scmp.eq.s32.totalorder %s28, 0
      %p137 = por %p135, %p136
      %p138 = scmp.ne.s32.totalorder %s130, %s132
      %p139 = scmp.eq.s32.totalorder %s33, 1
      %p140 = por %p138, %p139
      %p141 = scmp.ne.s32.totalorder %s132, %s133
      %p142 = scmp.eq.s32.totalorder %s33, 0
      %p143 = por %p141, %p142
      %p144 = scmp.ne.s32.totalorder %s132, %s133
      %p145 = scmp.eq.s32.totalorder %s34, 1
      %p146 = por %p144, %p145
      %p148 = scmp.ne.s32.totalorder %s133, %s147
      %p149 = scmp.eq.s32.totalorder %s34, 0
      %p150 = por %p148, %p149
      %s152 = sadd.s32 %s151, 1
      %p155 = scmp.eq.s32.totalorder %s28, 1
      %p156 = scmp.ne.s32.totalorder %s151, %s153
      %p157 = scmp.eq.s32.totalorder %s28, 0
      %p158 = por %p156, %p157
      %p159 = scmp.ne.s32.totalorder %s151, %s153
      %p160 = scmp.eq.s32.totalorder %s33, 1
      %p161 = por %p159, %p160
      %p162 = scmp.ne.s32.totalorder %s153, %s154
      %p163 = scmp.eq.s32.totalorder %s33, 0
      %p164 = por %p162, %p163
      %p165 = scmp.ne.s32.totalorder %s153, %s154
      %p166 = scmp.eq.s32.totalorder %s34, 1
      %p167 = por %p165, %p166
      %p169 = scmp.ne.s32.totalorder %s154, %s168
      %p170 = scmp.eq.s32.totalorder %s34, 0
      %p171 = por %p169, %p170
      %s173 = sadd.s32 %s172, 1
      %p176 = scmp.eq.s32.totalorder %s28, 1
      %p177 = scmp.ne.s32.totalorder %s172, %s174
      %p178 = scmp.eq.s32.totalorder %s28, 0
      %p179 = por %p177, %p178
      %p180 = scmp.ne.s32.totalorder %s172, %s174
      %p181 = scmp.eq.s32.totalorder %s33, 1
      %p182 = por %p180, %p181
      %p183 = scmp.ne.s32.totalorder %s174, %s175
      %p184 = scmp.eq.s32.totalorder %s33, 0
      %p185 = por %p183, %p184
      %p186 = scmp.ne.s32.totalorder %s174, %s175
      %p187 = scmp.eq.s32.totalorder %s34, 1
      %p188 = por %p186, %p187
      %p190 = scmp.ne.s32.totalorder %s175, %s189
      %p191 = scmp.eq.s32.totalorder %s34, 0
      %p192 = por %p190, %p191
      %s194 = sadd.s32 %s193, 1
      %p197 = scmp.eq.s32.totalorder %s28, 1
      %p198 = scmp.ne.s32.totalorder %s193, %s195
      %p199 = scmp.eq.s32.totalorder %s28, 0
      %p200 = por %p198, %p199
      %p201 = scmp.ne.s32.totalorder %s193, %s195
      %p202 = scmp.eq.s32.totalorder %s33, 1
      %p203 = por %p201, %p202
      %p204 = scmp.ne.s32.totalorder %s195, %s196
      %p205 = scmp.eq.s32.totalorder %s33, 0
      %p206 = por %p204, %p205
      %p207 = scmp.ne.s32.totalorder %s195, %s196
      %p208 = scmp.eq.s32.totalorder %s34, 1
      %p209 = por %p207, %p208
      %p211 = scmp.ne.s32.totalorder %s196, %s210
      %p212 = scmp.eq.s32.totalorder %s34, 0
      %p213 = por %p211, %p212
      %s215 = sadd.s32 %s214, 1
      %p218 = scmp.eq.s32.totalorder %s28, 1
      %p219 = scmp.ne.s32.totalorder %s214, %s216
      %p220 = scmp.eq.s32.totalorder %s28, 0
      %p221 = por %p219, %p220
      %p222 = scmp.ne.s32.totalorder %s214, %s216
      %p223 = scmp.eq.s32.totalorder %s33, 1
      %p224 = por %p222, %p223
      %p225 = scmp.ne.s32.totalorder %s216, %s217
      %p226 = scmp.eq.s32.totalorder %s33, 0
      %p227 = por %p225, %p226
      %p228 = scmp.ne.s32.totalorder %s216, %s217
      %p229 = scmp.eq.s32.totalorder %s34, 1
      %p230 = por %p228, %p229
      %p232 = scmp.ne.s32.totalorder %s217, %s231
      %p233 = scmp.eq.s32.totalorder %s34, 0
      %p234 = por %p232, %p233
      %s236 = sadd.s32 %s235, 1
      %p239 = scmp.eq.s32.totalorder %s28, 1
      %p240 = scmp.ne.s32.totalorder %s235, %s237
      %p241 = scmp.eq.s32.totalorder %s28, 0
      %p242 = por %p240, %p241
      %p243 = scmp.ne.s32.totalorder %s235, %s237
      %p244 = scmp.eq.s32.totalorder %s33, 1
      %p245 = por %p243, %p244
      %p246 = scmp.ne.s32.totalorder %s237, %s238
      %p247 = scmp.eq.s32.totalorder %s33, 0
      %p248 = por %p246, %p247
      %p249 = scmp.ne.s32.totalorder %s237, %s238
      %p250 = scmp.eq.s32.totalorder %s34, 1
      %p251 = por %p249, %p250
      %p253 = scmp.ne.s32.totalorder %s238, %s252
      %p254 = scmp.eq.s32.totalorder %s34, 0
      %p255 = por %p253, %p254
      %s257 = sadd.s32 %s256, 1
      %p260 = scmp.eq.s32.totalorder %s28, 1
      %p261 = scmp.ne.s32.totalorder %s256, %s258
      %p262 = scmp.eq.s32.totalorder %s28, 0
      %p263 = por %p261, %p262
      %p264 = scmp.ne.s32.totalorder %s256, %s258
      %p265 = scmp.eq.s32.totalorder %s33, 1
      %p266 = por %p264, %p265
      %p267 = scmp.ne.s32.totalorder %s258, %s259
      %p268 = scmp.eq.s32.totalorder %s33, 0
      %p269 = por %p267, %p268
      %p270 = scmp.ne.s32.totalorder %s258, %s259
      %p271 = scmp.eq.s32.totalorder %s34, 1
      %p272 = por %p270, %p271
      %p274 = scmp.ne.s32.totalorder %s259, %s273
      %p275 = scmp.eq.s32.totalorder %s34, 0
      %p276 = por %p274, %p275
      %s277 = ssub.s32 %s28, %s35
      %p278 = scmp.eq.s32.totalorder %s277, 0
      %s280 = sadd.s32 %s279, 1
      %s281 = scalar_select %p278, %s279, %s280
      %p284 = pneg %p278
      %p285 = scmp.eq.s32.totalorder %s28, 1
      %p286 = por %p284, %p285
      %p287 = scmp.ne.s32.totalorder %s279, %s282
      %p288 = scmp.eq.s32.totalorder %s28, 0
      %p289 = por %p287, %p288
      %p290 = scmp.ne.s32.totalorder %s279, %s282
      %p291 = scmp.eq.s32.totalorder %s33, 1
      %p292 = por %p290, %p291
      %p293 = scmp.ne.s32.totalorder %s282, %s283
      %p294 = scmp.eq.s32.totalorder %s33, 0
      %p295 = por %p293, %p294
      %p296 = scmp.ne.s32.totalorder %s282, %s283
      %p297 = scmp.eq.s32.totalorder %s34, 1
      %p298 = por %p296, %p297
      %p300 = scmp.ne.s32.totalorder %s283, %s299
      %p301 = scmp.eq.s32.totalorder %s34, 0
      %p302 = por %p300, %p301
      %p303 = scmp.le.s32.totalorder 1, %s28
      %p304 = scmp.lt.s32.totalorder %s28, 3
      %p305 = pnand %p303, %p304
      %p306 = pneg %p305
      // Predicated region
      $region9: #{tpu_custom_call.1} parent=5 // pred_check
        _
      $region10: #{tpu_custom_call.1} parent=5 // pred_check_branch
        %308 = sbr.rel (%p305) target = $region12
      $region11: #{tpu_custom_call.1} parent=5 // pred_region
        %s309 = ssub.s32 %s28, 1
        // Predicated region
        $region13: #{tpu_custom_call.1} parent=11 // pred_check
          %p310 = pneg %p49
        $region14: #{tpu_custom_call.1} parent=11 // pred_check_branch
          %312 = sbr.rel (%p310) target = $region16
        $region15: #{tpu_custom_call.1} parent=11 // pred_region
          %s314 = ssub.s32 128, 128
          %315 = vsyncadd [#allocation6], %s314
          %s317 = sshll.u32 %s0, 4
          %s318 = int_to_ptr.vmem [resolvable:$true] %s317
          %320 = dma.vmem_to_smem %s318, 128, [#allocation3], [#allocation6]
        $region16: #{tpu_custom_call.1} parent=11 // pred_fallthru
          _
        // Predicated region
        $region17: #{tpu_custom_call.1} parent=11 // pred_check
          %p321 = pneg %p122
        $region18: #{tpu_custom_call.1} parent=11 // pred_check_branch
          %323 = sbr.rel (%p321) target = $region20
        $region19: #{tpu_custom_call.1} parent=11 // pred_region
          _
        $region20: #{tpu_custom_call.1} parent=11 // pred_fallthru
          _
        // Predicated region
        $region21: #{tpu_custom_call.1} parent=11 // pred_check
          %p324 = pneg %p143
        $region22: #{tpu_custom_call.1} parent=11 // pred_check_branch
          %326 = sbr.rel (%p324) target = $region24
        $region23: #{tpu_custom_call.1} parent=11 // pred_region
          _
        $region24: #{tpu_custom_call.1} parent=11 // pred_fallthru
          _
        // Predicated region
        $region25: #{tpu_custom_call.1} parent=11 // pred_check
          %p327 = pneg %p164
        $region26: #{tpu_custom_call.1} parent=11 // pred_check_branch
          %329 = sbr.rel (%p327) target = $region28
        $region27: #{tpu_custom_call.1} parent=11 // pred_region
          _
        $region28: #{tpu_custom_call.1} parent=11 // pred_fallthru
          _
        // Predicated region
        $region29: #{tpu_custom_call.1} parent=11 // pred_check
          %p330 = pneg %p185
        $region30: #{tpu_custom_call.1} parent=11 // pred_check_branch
          %332 = sbr.rel (%p330) target = $region32
        $region31: #{tpu_custom_call.1} parent=11 // pred_region
          _
        $region32: #{tpu_custom_call.1} parent=11 // pred_fallthru
          _
        // Predicated region
        $region33: #{tpu_custom_call.1} parent=11 // pred_check
          %p333 = pneg %p206
        $region34: #{tpu_custom_call.1} parent=11 // pred_check_branch
          %335 = sbr.rel (%p333) target = $region36
        $region35: #{tpu_custom_call.1} parent=11 // pred_region
          %s337 = ssub.s32 4096, 4096
          %338 = vsyncadd [#allocation9], %s337
          %s339 = sshll.u32 [#allocation10], 4
          %s340 = int_to_ptr.vmem [resolvable:$true] %s339
          %345 = dma.hbm_to_vmem [thread:$0]  %s7, 4096, %s340, [#allocation9], 256, 256, 16
        $region36: #{tpu_custom_call.1} parent=11 // pred_fallthru
          _
        // Predicated region
        $region37: #{tpu_custom_call.1} parent=11 // pred_check
          %p346 = pneg %p227
        $region38: #{tpu_custom_call.1} parent=11 // pred_check_branch
          %348 = sbr.rel (%p346) target = $region40
        $region39: #{tpu_custom_call.1} parent=11 // pred_region
          _
        $region40: #{tpu_custom_call.1} parent=11 // pred_fallthru
          _
        // Predicated region
        $region41: #{tpu_custom_call.1} parent=11 // pred_check
          %p349 = pneg %p248
        $region42: #{tpu_custom_call.1} parent=11 // pred_check_branch
          %351 = sbr.rel (%p349) target = $region44
        $region43: #{tpu_custom_call.1} parent=11 // pred_region
          %s353 = ssub.s32 4096, 4096
          %354 = vsyncadd [#allocation12], %s353
          %s355 = sshll.u32 [#allocation11], 4
          %s356 = int_to_ptr.vmem [resolvable:$true] %s355
          %361 = dma.hbm_to_vmem [thread:$0]  %s9, 4096, %s356, [#allocation12], 64, 64, 4
        $region44: #{tpu_custom_call.1} parent=11 // pred_fallthru
          _
        // Predicated region
        $region45: #{tpu_custom_call.1} parent=11 // pred_check
          %p362 = pneg %p269
        $region46: #{tpu_custom_call.1} parent=11 // pred_check_branch
          %364 = sbr.rel (%p362) target = $region48
        $region47: #{tpu_custom_call.1} parent=11 // pred_region
          _
        $region48: #{tpu_custom_call.1} parent=11 // pred_fallthru
          _
      $region12: #{tpu_custom_call.1} parent=5 // pred_fallthru
        _
      %p365 = scmp.lt.s32.totalorder %s28, 2
      // Predicated region
      $region49: #{tpu_custom_call.1} parent=5 // pred_check
        %p366 = pneg %p365
      $region50: #{tpu_custom_call.1} parent=5 // pred_check_branch
        %368 = sbr.rel (%p366) target = $region52
      $region51: #{tpu_custom_call.1} parent=5 // pred_region
        // Predicated region
        $region53: #{tpu_custom_call.1} parent=51 // pred_check
          %p369 = pneg %p69
        $region54: #{tpu_custom_call.1} parent=51 // pred_check_branch
          %371 = sbr.rel (%p369) target = $region56
        $region55: #{tpu_custom_call.1} parent=51 // pred_region
          %s372 = sand.u32 %s59, 1
          %s373 = scalar_lea.sflag [#allocation4], %s372
          %s374 = sand.u32 %s59, 1
          %s375 = smul.addr %s374, 16
          %s376 = scalar_lea.vmem [#allocation7], %s375
          %s377 = smul.u32 2, %s28
          %s379 = ssub.s32 256, 256
          %380 = vsyncadd %s373, %s379
          %s381 = smul.addr %s377, 128
          %s382 = scalar_lea.hbm %s1, %s381
          %s383 = sshll.u32 %s376, 4
          %s384 = int_to_ptr.vmem [resolvable:$true] %s383
          %389 = dma.hbm_to_vmem [thread:$0]  %s382, 256, %s384, %s373, 128, 128, 8
        $region56: #{tpu_custom_call.1} parent=51 // pred_fallthru
          _
        // Predicated region
        $region57: #{tpu_custom_call.1} parent=51 // pred_check
          %p390 = pneg %p95
        $region58: #{tpu_custom_call.1} parent=51 // pred_check_branch
          %392 = sbr.rel (%p390) target = $region60
        $region59: #{tpu_custom_call.1} parent=51 // pred_region
          %s393 = sand.u32 %s28, 1
          %s394 = scalar_lea.sflag [#allocation9], %s393
          %s395 = sand.u32 %s85, 1
          %s396 = smul.addr %s395, 16
          %s397 = scalar_lea.vmem [#allocation8], %s396
          %s398 = smul.u32 2, %s28
          %s400 = ssub.s32 256, 256
          %401 = vsyncadd %s394, %s400
          %s402 = smul.addr %s398, 128
          %s403 = scalar_lea.hbm %s2, %s402
          %s404 = sshll.u32 %s397, 4
          %s405 = int_to_ptr.vmem [resolvable:$true] %s404
          %410 = dma.hbm_to_vmem [thread:$0]  %s403, 256, %s405, %s394, 128, 128, 8
        $region60: #{tpu_custom_call.1} parent=51 // pred_fallthru
          _
      $region52: #{tpu_custom_call.1} parent=5 // pred_fallthru
        _
      %p411 = scmp.le.s32.totalorder 1, %s28
      %p412 = scmp.lt.s32.totalorder %s28, 3
      %p413 = pnand %p411, %p412
      %p414 = pneg %p413
      // Predicated region
      $region61: #{tpu_custom_call.1} parent=5 // pred_check
        _
      $region62: #{tpu_custom_call.1} parent=5 // pred_check_branch
        %416 = sbr.rel (%p413) target = $region64
      $region63: #{tpu_custom_call.1} parent=5 // pred_region
        %s417 = ssub.s32 %s28, 1
        // Predicated region
        $region65: #{tpu_custom_call.1} parent=63 // pred_check
          %p418 = pneg %p49
        $region66: #{tpu_custom_call.1} parent=63 // pred_check_branch
          %420 = sbr.rel (%p418) target = $region68
        $region67: #{tpu_custom_call.1} parent=63 // pred_region
          %421 = dma.done [#allocation6], 128
        $region68: #{tpu_custom_call.1} parent=63 // pred_fallthru
          _
        %s422 = sand.u32 %s62, 1
        %s423 = scalar_lea.sflag [#allocation4], %s422
        %s424 = sand.u32 %s62, 1
        %s425 = smul.addr %s424, 16
        %s426 = scalar_lea.vmem [#allocation7], %s425
        // Predicated region
        $region69: #{tpu_custom_call.1} parent=63 // pred_check
          %p427 = pneg %p75
        $region70: #{tpu_custom_call.1} parent=63 // pred_check_branch
          %429 = sbr.rel (%p427) target = $region72
        $region71: #{tpu_custom_call.1} parent=63 // pred_region
          %430 = dma.done %s423, 256
        $region72: #{tpu_custom_call.1} parent=63 // pred_fallthru
          _
        %s431 = sand.u32 %s33, 1
        %s432 = scalar_lea.sflag [#allocation9], %s431
        %s433 = sand.u32 %s88, 1
        %s434 = smul.addr %s433, 16
        %s435 = scalar_lea.vmem [#allocation8], %s434
        // Predicated region
        $region73: #{tpu_custom_call.1} parent=63 // pred_check
          %p436 = pneg %p101
        $region74: #{tpu_custom_call.1} parent=63 // pred_check_branch
          %438 = sbr.rel (%p436) target = $region76
        $region75: #{tpu_custom_call.1} parent=63 // pred_region
          %439 = dma.done %s432, 256
        $region76: #{tpu_custom_call.1} parent=63 // pred_fallthru
          _
        // Predicated region
        $region77: #{tpu_custom_call.1} parent=63 // pred_check
          %p440 = pneg %p206
        $region78: #{tpu_custom_call.1} parent=63 // pred_check_branch
          %442 = sbr.rel (%p440) target = $region80
        $region79: #{tpu_custom_call.1} parent=63 // pred_region
          %443 = dma.done [#allocation9], 4096
        $region80: #{tpu_custom_call.1} parent=63 // pred_fallthru
          _
        // Predicated region
        $region81: #{tpu_custom_call.1} parent=63 // pred_check
          %p444 = pneg %p248
        $region82: #{tpu_custom_call.1} parent=63 // pred_check_branch
          %446 = sbr.rel (%p444) target = $region84
        $region83: #{tpu_custom_call.1} parent=63 // pred_region
          %447 = dma.done [#allocation12], 4096
        $region84: #{tpu_custom_call.1} parent=63 // pred_fallthru
          _
        %448 = sfence
        %p449 = pneg %p49
        %p450 = pneg %p46
        %s451 = sand.u32 %s62, 1
        %s452 = scalar_lea.sflag [#allocation4], %s451
        %s453 = sand.u32 %s62, 1
        %s454 = smul.addr %s453, 16
        %s455 = scalar_lea.vmem [#allocation7], %s454
        %p456 = pneg %p75
        %p457 = pneg %p72
        %s458 = sand.u32 %s33, 1
        %s459 = scalar_lea.sflag [#allocation9], %s458
        %s460 = sand.u32 %s88, 1
        %s461 = smul.addr %s460, 16
        %s462 = scalar_lea.vmem [#allocation8], %s461
        %p463 = pneg %p101
        %p464 = pneg %p98
        %p465 = pneg %p122
        %p466 = pneg %p119
        %p467 = pneg %p143
        %p468 = pneg %p140
        %p469 = pneg %p164
        %p470 = pneg %p161
        %p471 = pneg %p185
        %p472 = pneg %p182
        %p473 = pneg %p206
        %p474 = pneg %p203
        %p475 = pneg %p227
        %p476 = pneg %p224
        %p477 = pneg %p248
        %p478 = pneg %p245
        %p479 = pneg %p269
        %p480 = pneg %p266
        %p481 = pneg %p295
        %p482 = pneg %p292
        %s483 = sand.u32 %s282, 1
        %s484 = scalar_lea.sflag [#allocation5], %s483
        %s485 = sand.u32 %s282, 1
        %s486 = smul.addr %s485, 16
        %s487 = scalar_lea.vmem [#allocation13], %s486
        %s488 = smul.u32 2, %s33
        %s489 = smul.u32 2, %s33
        %s490 = smul.u32 2, %s33
        %v492 = vld [vmem:[%s426] sm:$0xff]
        %v493 = vld [vmem:[%s426 + $0x8] sm:$0xff]
        %v494 = vld [vmem:[%s435] sm:$0xff]
        %v495 = vld [vmem:[%s435 + $0x8] sm:$0xff]
        %v496 = vmul.f32 %v492, %v494
        %v497 = vmul.f32 %v493, %v495
        %v498 = vld [vmem:[%s4] sm:$0x1]
        %v500 = vlaneseq
        %v501 = vshrl.u32 %v500, 7
        %v502 = vsub.s32 0, %v501
        %v503 = vrot.slane %v498, %v502
        %v505 = vld [vmem:[%s5] sm:$0x1]
        %v507 = vlaneseq
        %v508 = vshrl.u32 %v507, 7
        %v509 = vsub.s32 0, %v508
        %v510 = vrot.slane %v505, %v509
        %v512 = vld [vmem:[%s6] sm:$0x1]
        %v514 = vlaneseq
        %v515 = vshrl.u32 %v514, 7
        %v516 = vsub.s32 0, %v515
        %v517 = vrot.slane %v512, %v516
        %v519 = vmul.f32 %v494, 2.0
        %v520 = vmul.f32 %v495, 2.0
        %v521 = vadd.f32 %v519, %v496
        %v522 = vadd.f32 %v520, %v497
        %v523 = vld [vmem:[%s3 + $0x4] sm:$0x1]
        %v524 = vlaneseq
        %v525 = vshrl.u32 %v524, 7
        %v526 = vsub.s32 0, %v525
        %v527 = vrot.slane %v523, %v526
        %v528 = vadd.f32 %v521, %v527
        %v529 = vadd.f32 %v522, %v527
        %s530 = sld [smem:[#allocation3 + $0x200]]
        %v531 = vstv %s530
        %v532 = vmul.f32 %v531, %v492
        %v533 = vmul.f32 %v531, %v493
        %s534 = sld [smem:[#allocation3 + $0x201]]
        %v535 = vstv %s534
        %v536 = vmul.f32 %v535, %v494
        %v537 = vmul.f32 %v535, %v495
        %v538 = vadd.f32 %v532, %v536
        %v539 = vadd.f32 %v533, %v537
        %s540 = sld [smem:[#allocation3 + $0x202]]
        %v541 = vstv %s540
        %v542 = vmul.f32 %v541, %v496
        %v543 = vmul.f32 %v541, %v497
        %v544 = vadd.f32 %v538, %v542
        %v545 = vadd.f32 %v539, %v543
        %v546 = vmul.f32 %v503, %v544
        %v547 = vmul.f32 %v503, %v545
        %v548 = vadd.f32 %v528, %v546
        %v549 = vadd.f32 %v529, %v547
        %v550 = vsub.f32 %v494, %v492
        %v551 = vsub.f32 %v495, %v493
        %s552 = sld [smem:[#allocation3]]
        %v553 = vstv %s552
        %v554 = vmul.f32 %v553, %v492
        %v555 = vmul.f32 %v553, %v493
        %s556 = sld [smem:[#allocation3 + $0x1]]
        %v557 = vstv %s556
        %v558 = vmul.f32 %v557, %v494
        %v559 = vmul.f32 %v557, %v495
        %v560 = vadd.f32 %v554, %v558
        %v561 = vadd.f32 %v555, %v559
        %s562 = sld [smem:[#allocation3 + $0x2]]
        %v563 = vstv %s562
        %v564 = vmul.f32 %v563, %v496
        %v565 = vmul.f32 %v563, %v497
        %v566 = vadd.f32 %v560, %v564
        %v567 = vadd.f32 %v561, %v565
        %v568 = vld [vmem:[%s3] sm:$0x1]
        %v569 = vlaneseq
        %v570 = vshrl.u32 %v569, 7
        %v571 = vsub.s32 0, %v570
        %v572 = vrot.slane %v568, %v571
        %v573 = vadd.f32 %v492, %v572
        %v574 = vadd.f32 %v493, %v572
        %v575 = vmul.f32 %v503, %v566
        %v576 = vmul.f32 %v503, %v567
        %v577 = vadd.f32 %v573, %v575
        %v578 = vadd.f32 %v574, %v576
        %v579 = vmul.f32 %v577, %v510
        %v580 = vmul.f32 %v578, %v510
        %v581 = vadd.f32 %v579, %v517
        %v582 = vadd.f32 %v580, %v517
        %v583 = vpack.c.bf16 %v582, %v581
        %584 = vst [vmem:[#allocation2] sm:$0xff] %v583
        %s585 = sld [smem:[#allocation3 + $0x80]]
        %v586 = vstv %s585
        %v587 = vmul.f32 %v586, %v492
        %v588 = vmul.f32 %v586, %v493
        %s589 = sld [smem:[#allocation3 + $0x81]]
        %v590 = vstv %s589
        %v591 = vmul.f32 %v590, %v494
        %v592 = vmul.f32 %v590, %v495
        %v593 = vadd.f32 %v587, %v591
        %v594 = vadd.f32 %v588, %v592
        %s595 = sld [smem:[#allocation3 + $0x82]]
        %v596 = vstv %s595
        %v597 = vmul.f32 %v596, %v496
        %v598 = vmul.f32 %v596, %v497
        %v599 = vadd.f32 %v593, %v597
        %v600 = vadd.f32 %v594, %v598
        %v601 = vld [vmem:[%s3 + $0x1] sm:$0x1]
        %v602 = vlaneseq
        %v603 = vshrl.u32 %v602, 7
        %v604 = vsub.s32 0, %v603
        %v605 = vrot.slane %v601, %v604
        %v606 = vadd.f32 %v494, %v605
        %v607 = vadd.f32 %v495, %v605
        %v608 = vmul.f32 %v503, %v599
        %v609 = vmul.f32 %v503, %v600
        %v610 = vadd.f32 %v606, %v608
        %v611 = vadd.f32 %v607, %v609
        %v612 = vmul.f32 %v610, %v510
        %v613 = vmul.f32 %v611, %v510
        %v614 = vadd.f32 %v612, %v517
        %v615 = vadd.f32 %v613, %v517
        %v616 = vpack.c.bf16 %v615, %v614
        %617 = vst [vmem:[#allocation2 + $0x8] sm:$0xff] %v616
        %s618 = sld [smem:[#allocation3 + $0x100]]
        %v619 = vstv %s618
        %v620 = vmul.f32 %v619, %v492
        %v621 = vmul.f32 %v619, %v493
        %s622 = sld [smem:[#allocation3 + $0x101]]
        %v623 = vstv %s622
        %v624 = vmul.f32 %v623, %v494
        %v625 = vmul.f32 %v623, %v495
        %v626 = vadd.f32 %v620, %v624
        %v627 = vadd.f32 %v621, %v625
        %s628 = sld [smem:[#allocation3 + $0x102]]
        %v629 = vstv %s628
        %v630 = vmul.f32 %v629, %v496
        %v631 = vmul.f32 %v629, %v497
        %v632 = vadd.f32 %v626, %v630
        %v633 = vadd.f32 %v627, %v631
        %v634 = vld [vmem:[%s3 + $0x2] sm:$0x1]
        %v635 = vlaneseq
        %v636 = vshrl.u32 %v635, 7
        %v637 = vsub.s32 0, %v636
        %v638 = vrot.slane %v634, %v637
        %v639 = vadd.f32 %v496, %v638
        %v640 = vadd.f32 %v497, %v638
        %v641 = vmul.f32 %v503, %v632
        %v642 = vmul.f32 %v503, %v633
        %v643 = vadd.f32 %v639, %v641
        %v644 = vadd.f32 %v640, %v642
        %v645 = vmul.f32 %v643, %v510
        %v646 = vmul.f32 %v644, %v510
        %v647 = vadd.f32 %v645, %v517
        %v648 = vadd.f32 %v646, %v517
        %v649 = vpack.c.bf16 %v648, %v647
        %650 = vst [vmem:[#allocation2 + $0x10] sm:$0xff] %v649
        %s651 = sld [smem:[#allocation3 + $0x180]]
        %v652 = vstv %s651
        %v653 = vmul.f32 %v652, %v492
        %v654 = vmul.f32 %v652, %v493
        %s655 = sld [smem:[#allocation3 + $0x181]]
        %v656 = vstv %s655
        %v657 = vmul.f32 %v656, %v494
        %v658 = vmul.f32 %v656, %v495
        %v659 = vadd.f32 %v653, %v657
        %v660 = vadd.f32 %v654, %v658
        %s661 = sld [smem:[#allocation3 + $0x182]]
        %v662 = vstv %s661
        %v663 = vmul.f32 %v662, %v496
        %v664 = vmul.f32 %v662, %v497
        %v665 = vadd.f32 %v659, %v663
        %v666 = vadd.f32 %v660, %v664
        %v667 = vld [vmem:[%s3 + $0x3] sm:$0x1]
        %v668 = vlaneseq
        %v669 = vshrl.u32 %v668, 7
        %v670 = vsub.s32 0, %v669
        %v671 = vrot.slane %v667, %v670
        %v672 = vadd.f32 %v550, %v671
        %v673 = vadd.f32 %v551, %v671
        %v674 = vmul.f32 %v503, %v665
        %v675 = vmul.f32 %v503, %v666
        %v676 = vadd.f32 %v672, %v674
        %v677 = vadd.f32 %v673, %v675
        %v678 = vmul.f32 %v676, %v510
        %v679 = vmul.f32 %v677, %v510
        %v680 = vadd.f32 %v678, %v517
        %v681 = vadd.f32 %v679, %v517
        %v682 = vpack.c.bf16 %v681, %v680
        %683 = vst [vmem:[#allocation2 + $0x18] sm:$0xff] %v682
        %v684 = vld [vmem:[#allocation2] sm:$0xff]
        %v685 = vld [vmem:[#allocation2 + $0x8] sm:$0xff]
        %v686 = vld [vmem:[#allocation2 + $0x10] sm:$0xff]
        %v687 = vld [vmem:[#allocation2 + $0x18] sm:$0xff]
        %v688 = vld [vmem:[#allocation10] sm:$0xff]
        %v689 = vld [vmem:[#allocation10 + $0x8] sm:$0xff]
        %v690 = vld [vmem:[#allocation10 + $0x10] sm:$0xff]
        %v691 = vld [vmem:[#allocation10 + $0x18] sm:$0xff]
        %v692 = vld [vmem:[#allocation10 + $0x20] sm:$0xff]
        %v693 = vld [vmem:[#allocation10 + $0x28] sm:$0xff]
        %v694 = vld [vmem:[#allocation10 + $0x30] sm:$0xff]
        %v695 = vld [vmem:[#allocation10 + $0x38] sm:$0xff]
        %v696 = vld [vmem:[#allocation10 + $0x40] sm:$0xff]
        %v697 = vld [vmem:[#allocation10 + $0x48] sm:$0xff]
        %v698 = vld [vmem:[#allocation10 + $0x50] sm:$0xff]
        %v699 = vld [vmem:[#allocation10 + $0x58] sm:$0xff]
        %v700 = vld [vmem:[#allocation10 + $0x60] sm:$0xff]
        %v701 = vld [vmem:[#allocation10 + $0x68] sm:$0xff]
        %v702 = vld [vmem:[#allocation10 + $0x70] sm:$0xff]
        %v703 = vld [vmem:[#allocation10 + $0x78] sm:$0xff]
        %v704 = vld [vmem:[#allocation10 + $0x80] sm:$0xff]
        %v705 = vld [vmem:[#allocation10 + $0x88] sm:$0xff]
        %v706 = vld [vmem:[#allocation10 + $0x90] sm:$0xff]
        %v707 = vld [vmem:[#allocation10 + $0x98] sm:$0xff]
        %v708 = vld [vmem:[#allocation10 + $0xa0] sm:$0xff]
        %v709 = vld [vmem:[#allocation10 + $0xa8] sm:$0xff]
        %v710 = vld [vmem:[#allocation10 + $0xb0] sm:$0xff]
        %v711 = vld [vmem:[#allocation10 + $0xb8] sm:$0xff]
        %v712 = vld [vmem:[#allocation10 + $0xc0] sm:$0xff]
        %v713 = vld [vmem:[#allocation10 + $0xc8] sm:$0xff]
        %v714 = vld [vmem:[#allocation10 + $0xd0] sm:$0xff]
        %v715 = vld [vmem:[#allocation10 + $0xd8] sm:$0xff]
        %v716 = vld [vmem:[#allocation10 + $0xe0] sm:$0xff]
        %v717 = vld [vmem:[#allocation10 + $0xe8] sm:$0xff]
        %v718 = vld [vmem:[#allocation10 + $0xf0] sm:$0xff]
        %v719 = vld [vmem:[#allocation10 + $0xf8] sm:$0xff]
        %v720 = vld [vmem:[%s8] sm:$0xf]
        %v722 = vlaneseq
        %v723 = vshrl.u32 %v722, 7
        %v724 = vsub.s32 0, %v723
        %v725 = vrot.slane %v720, %v724
        %v726 = vlaneseq
        %v727 = vshrl.u32 %v726, 7
        %v728 = vsub.s32 1, %v727
        %v729 = vrot.slane %v720, %v728
        %v730 = vlaneseq
        %v731 = vshrl.u32 %v730, 7
        %v732 = vsub.s32 2, %v731
        %v733 = vrot.slane %v720, %v732
        %v734 = vlaneseq
        %v735 = vshrl.u32 %v734, 7
        %v736 = vsub.s32 3, %v735
        %v737 = vrot.slane %v720, %v736
        %v774 = vunpack.c.l.b16 %v688
        %v775 = vunpack.c.h.b16 %v688
        %v776 = vunpack.c.l.b16 %v689
        %v777 = vunpack.c.h.b16 %v689
        %v778 = vunpack.c.l.b16 %v690
        %v779 = vunpack.c.h.b16 %v690
        %v780 = vunpack.c.l.b16 %v691
        %v781 = vunpack.c.h.b16 %v691
        %v782 = vunpack.c.l.b16 %v692
        %v783 = vunpack.c.h.b16 %v692
        %v784 = vunpack.c.l.b16 %v693
        %v785 = vunpack.c.h.b16 %v693
        %v786 = vunpack.c.l.b16 %v694
        %v787 = vunpack.c.h.b16 %v694
        %v788 = vunpack.c.l.b16 %v695
        %v789 = vunpack.c.h.b16 %v695
        %v790 = vunpack.c.l.b16 %v696
        %v791 = vunpack.c.h.b16 %v696
        %v792 = vunpack.c.l.b16 %v697
        %v793 = vunpack.c.h.b16 %v697
        %v794 = vunpack.c.l.b16 %v698
        %v795 = vunpack.c.h.b16 %v698
        %v796 = vunpack.c.l.b16 %v699
        %v797 = vunpack.c.h.b16 %v699
        %v798 = vunpack.c.l.b16 %v700
        %v799 = vunpack.c.h.b16 %v700
        %v800 = vunpack.c.l.b16 %v701
        %v801 = vunpack.c.h.b16 %v701
        %v802 = vunpack.c.l.b16 %v702
        %v803 = vunpack.c.h.b16 %v702
        %v804 = vunpack.c.l.b16 %v703
        %v805 = vunpack.c.h.b16 %v703
        %v806 = vunpack.c.l.b16 %v704
        %v807 = vunpack.c.h.b16 %v704
        %v808 = vunpack.c.l.b16 %v705
        %v809 = vunpack.c.h.b16 %v705
        %v810 = vunpack.c.l.b16 %v706
        %v811 = vunpack.c.h.b16 %v706
        %v812 = vunpack.c.l.b16 %v707
        %v813 = vunpack.c.h.b16 %v707
        %v814 = vunpack.c.l.b16 %v708
        %v815 = vunpack.c.h.b16 %v708
        %v816 = vunpack.c.l.b16 %v709
        %v817 = vunpack.c.h.b16 %v709
        %v818 = vunpack.c.l.b16 %v710
        %v819 = vunpack.c.h.b16 %v710
        %v820 = vunpack.c.l.b16 %v711
        %v821 = vunpack.c.h.b16 %v711
        %v822 = vunpack.c.l.b16 %v712
        %v823 = vunpack.c.h.b16 %v712
        %v824 = vunpack.c.l.b16 %v713
        %v825 = vunpack.c.h.b16 %v713
        %v826 = vunpack.c.l.b16 %v714
        %v827 = vunpack.c.h.b16 %v714
        %v828 = vunpack.c.l.b16 %v715
        %v829 = vunpack.c.h.b16 %v715
        %v830 = vunpack.c.l.b16 %v716
        %v831 = vunpack.c.h.b16 %v716
        %v832 = vunpack.c.l.b16 %v717
        %v833 = vunpack.c.h.b16 %v717
        %v834 = vunpack.c.l.b16 %v718
        %v835 = vunpack.c.h.b16 %v718
        %v836 = vunpack.c.l.b16 %v719
        %v837 = vunpack.c.h.b16 %v719
        %v838 = vpack.c.b16 %v778, %v774
        %v839 = vpack.c.b16 %v779, %v775
        %v840 = vpack.c.b16 %v780, %v776
        %v841 = vpack.c.b16 %v781, %v777
        %v842 = vpack.c.b16 %v786, %v782
        %v843 = vpack.c.b16 %v787, %v783
        %v844 = vpack.c.b16 %v788, %v784
        %v845 = vpack.c.b16 %v789, %v785
        %v846 = vpack.c.b16 %v794, %v790
        %v847 = vpack.c.b16 %v795, %v791
        %v848 = vpack.c.b16 %v796, %v792
        %v849 = vpack.c.b16 %v797, %v793
        %v850 = vpack.c.b16 %v802, %v798
        %v851 = vpack.c.b16 %v803, %v799
        %v852 = vpack.c.b16 %v804, %v800
        %v853 = vpack.c.b16 %v805, %v801
        %v854 = vpack.c.b16 %v810, %v806
        %v855 = vpack.c.b16 %v811, %v807
        %v856 = vpack.c.b16 %v812, %v808
        %v857 = vpack.c.b16 %v813, %v809
        %v858 = vpack.c.b16 %v818, %v814
        %v859 = vpack.c.b16 %v819, %v815
        %v860 = vpack.c.b16 %v820, %v816
        %v861 = vpack.c.b16 %v821, %v817
        %v862 = vpack.c.b16 %v826, %v822
        %v863 = vpack.c.b16 %v827, %v823
        %v864 = vpack.c.b16 %v828, %v824
        %v865 = vpack.c.b16 %v829, %v825
        %v866 = vpack.c.b16 %v834, %v830
        %v867 = vpack.c.b16 %v835, %v831
        %v868 = vpack.c.b16 %v836, %v832
        %v869 = vpack.c.b16 %v837, %v833
        %902 = vmatprep.subr.bf16.mxu0 %v839
        %903 = vmatpush1.bf16.msra.mxu0 %v838
        %904 = vmatprep.subr.bf16.mxu0 %v843
        %905 = vmatpush1.bf16.msra.mxu0 %v842
        %906 = vmatprep.subr.bf16.mxu0 %v847
        %907 = vmatpush1.bf16.msra.mxu0 %v846
        %908 = vmatprep.subr.bf16.mxu0 %v851
        %909 = vmatpush1.bf16.msra.mxu0 %v850
        %910 = vmatprep.subr.bf16.mxu0 %v855
        %911 = vmatpush1.bf16.msra.mxu0 %v854
        %912 = vmatprep.subr.bf16.mxu0 %v859
        %913 = vmatpush1.bf16.msra.mxu0 %v858
        %914 = vmatprep.subr.bf16.mxu0 %v863
        %915 = vmatpush1.bf16.msra.mxu0 %v862
        %916 = vmatprep.subr.bf16.mxu0 %v867
        %917 = vmatpush1.bf16.msra.mxu0 %v866
        %918 = vmatprep.subr.bf16.mxu0 0
        %919 = vmatpush1.bf16.msra.mxu0 0
        %920 = vmatprep.subr.bf16.mxu0 0
        %921 = vmatpush1.bf16.msra.mxu0 0
        %922 = vmatprep.subr.bf16.mxu0 0
        %923 = vmatpush1.bf16.msra.mxu0 0
        %924 = vmatprep.subr.bf16.mxu0 0
        %925 = vmatpush1.bf16.msra.mxu0 0
        %926 = vmatprep.subr.bf16.mxu0 0
        %927 = vmatpush1.bf16.msra.mxu0 0
        %928 = vmatprep.subr.bf16.mxu0 0
        %929 = vmatpush1.bf16.msra.mxu0 0
        %930 = vmatprep.subr.bf16.mxu0 0
        %931 = vmatpush1.bf16.msra.mxu0 0
        %932 = vmatprep.subr.bf16.mxu0 0
        %933 = vmatpush1.bf16.msra.mxu0 0
        %934 = vmatprep.mubr.bf16.mxu0 0
        %935 = vmatmul.mubr.bf16.gmra.mrb[0].mxu0 %v684
        %v936 = vpop.f32.mrb[0].mxu0
        %v937 = vadd.f32 %v725, %v936
        %v938 = vpop.f32.mrb[0].mxu0
        %v939 = vadd.f32 %v729, %v938
        %v940 = vpop.f32.mrb[0].mxu0
        %v941 = vadd.f32 %v725, %v940
        %v942 = vpop.f32.mrb[0].mxu0
        %v943 = vadd.f32 %v729, %v942
        %944 = vmatprep.mubr.bf16.mxu0 0
        %945 = vmatmul.mubr.bf16.gmra.mrb[0].mxu0 %v685
        %v946 = vpop.f32.mrb[0].mxu0
        %v947 = vadd.f32 %v725, %v946
        %v948 = vpop.f32.mrb[0].mxu0
        %v949 = vadd.f32 %v729, %v948
        %v950 = vpop.f32.mrb[0].mxu0
        %v951 = vadd.f32 %v725, %v950
        %v952 = vpop.f32.mrb[0].mxu0
        %v953 = vadd.f32 %v729, %v952
        %954 = vmatprep.mubr.bf16.mxu0 0
        %955 = vmatmul.mubr.bf16.gmra.mrb[0].mxu0 %v686
        %v956 = vpop.f32.mrb[0].mxu0
        %v957 = vadd.f32 %v725, %v956
        %v958 = vpop.f32.mrb[0].mxu0
        %v959 = vadd.f32 %v729, %v958
        %v960 = vpop.f32.mrb[0].mxu0
        %v961 = vadd.f32 %v725, %v960
        %v962 = vpop.f32.mrb[0].mxu0
        %v963 = vadd.f32 %v729, %v962
        %964 = vmatprep.mubr.bf16.mxu0 0
        %965 = vmatmul.mubr.bf16.gmra.mrb[0].mxu0 %v687
        %v966 = vpop.f32.mrb[0].mxu0
        %v967 = vadd.f32 %v725, %v966
        %v968 = vpop.f32.mrb[0].mxu0
        %v969 = vadd.f32 %v729, %v968
        %v970 = vpop.f32.mrb[0].mxu0
        %v971 = vadd.f32 %v725, %v970
        %v972 = vpop.f32.mrb[0].mxu0
        %v973 = vadd.f32 %v729, %v972
        %974 = vdwg.mxu0
        %975 = vmatprep.subr.bf16.mxu0 %v841
        %976 = vmatpush1.bf16.msra.mxu0 %v840
        %977 = vmatprep.subr.bf16.mxu0 %v845
        %978 = vmatpush1.bf16.msra.mxu0 %v844
        %979 = vmatprep.subr.bf16.mxu0 %v849
        %980 = vmatpush1.bf16.msra.mxu0 %v848
        %981 = vmatprep.subr.bf16.mxu0 %v853
        %982 = vmatpush1.bf16.msra.mxu0 %v852
        %983 = vmatprep.subr.bf16.mxu0 %v857
        %984 = vmatpush1.bf16.msra.mxu0 %v856
        %985 = vmatprep.subr.bf16.mxu0 %v861
        %986 = vmatpush1.bf16.msra.mxu0 %v860
        %987 = vmatprep.subr.bf16.mxu0 %v865
        %988 = vmatpush1.bf16.msra.mxu0 %v864
        %989 = vmatprep.subr.bf16.mxu0 %v869
        %990 = vmatpush1.bf16.msra.mxu0 %v868
        %991 = vmatprep.subr.bf16.mxu0 0
        %992 = vmatpush1.bf16.msra.mxu0 0
        %993 = vmatprep.subr.bf16.mxu0 0
        %994 = vmatpush1.bf16.msra.mxu0 0
        %995 = vmatprep.subr.bf16.mxu0 0
        %996 = vmatpush1.bf16.msra.mxu0 0
        %997 = vmatprep.subr.bf16.mxu0 0
        %998 = vmatpush1.bf16.msra.mxu0 0
        %999 = vmatprep.subr.bf16.mxu0 0
        %1000 = vmatpush1.bf16.msra.mxu0 0
        %1001 = vmatprep.subr.bf16.mxu0 0
        %1002 = vmatpush1.bf16.msra.mxu0 0
        %1003 = vmatprep.subr.bf16.mxu0 0
        %1004 = vmatpush1.bf16.msra.mxu0 0
        %1005 = vmatprep.subr.bf16.mxu0 0
        %1006 = vmatpush1.bf16.msra.mxu0 0
        %1007 = vmatprep.mubr.bf16.mxu0 0
        %1008 = vmatmul.mubr.bf16.gmra.mrb[0].mxu0 %v684
        %v1009 = vpop.f32.mrb[0].mxu0
        %v1010 = vadd.f32 %v733, %v1009
        %v1011 = vpop.f32.mrb[0].mxu0
        %v1012 = vadd.f32 %v737, %v1011
        %v1013 = vpop.f32.mrb[0].mxu0
        %v1014 = vadd.f32 %v733, %v1013
        %v1015 = vpop.f32.mrb[0].mxu0
        %v1016 = vadd.f32 %v737, %v1015
        %1017 = vmatprep.mubr.bf16.mxu0 0
        %1018 = vmatmul.mubr.bf16.gmra.mrb[0].mxu0 %v685
        %v1019 = vpop.f32.mrb[0].mxu0
        %v1020 = vadd.f32 %v733, %v1019
        %v1021 = vpop.f32.mrb[0].mxu0
        %v1022 = vadd.f32 %v737, %v1021
        %v1023 = vpop.f32.mrb[0].mxu0
        %v1024 = vadd.f32 %v733, %v1023
        %v1025 = vpop.f32.mrb[0].mxu0
        %v1026 = vadd.f32 %v737, %v1025
        %1027 = vmatprep.mubr.bf16.mxu0 0
        %1028 = vmatmul.mubr.bf16.gmra.mrb[0].mxu0 %v686
        %v1029 = vpop.f32.mrb[0].mxu0
        %v1030 = vadd.f32 %v733, %v1029
        %v1031 = vpop.f32.mrb[0].mxu0
        %v1032 = vadd.f32 %v737, %v1031
        %v1033 = vpop.f32.mrb[0].mxu0
        %v1034 = vadd.f32 %v733, %v1033
        %v1035 = vpop.f32.mrb[0].mxu0
        %v1036 = vadd.f32 %v737, %v1035
        %1037 = vmatprep.mubr.bf16.mxu0 0
        %1038 = vmatmul.mubr.bf16.gmra.mrb[0].mxu0 %v687
        %v1039 = vpop.f32.mrb[0].mxu0
        %v1040 = vadd.f32 %v733, %v1039
        %v1041 = vpop.f32.mrb[0].mxu0
        %v1042 = vadd.f32 %v737, %v1041
        %v1043 = vpop.f32.mrb[0].mxu0
        %v1044 = vadd.f32 %v733, %v1043
        %v1045 = vpop.f32.mrb[0].mxu0
        %v1046 = vadd.f32 %v737, %v1045
        %1047 = vdwg.mxu0
        %v1048 = vmul.f32 %v937, %v937
        %v1049 = vmul.f32 %v939, %v939
        %v1050 = vmul.f32 %v1010, %v1010
        %v1051 = vmul.f32 %v1012, %v1012
        %v1052 = vmul.f32 %v941, %v941
        %v1053 = vmul.f32 %v943, %v943
        %v1054 = vmul.f32 %v1014, %v1014
        %v1055 = vmul.f32 %v1016, %v1016
        %v1056 = vmul.f32 %v947, %v947
        %v1057 = vmul.f32 %v949, %v949
        %v1058 = vmul.f32 %v1020, %v1020
        %v1059 = vmul.f32 %v1022, %v1022
        %v1060 = vmul.f32 %v951, %v951
        %v1061 = vmul.f32 %v953, %v953
        %v1062 = vmul.f32 %v1024, %v1024
        %v1063 = vmul.f32 %v1026, %v1026
        %v1064 = vmul.f32 %v957, %v957
        %v1065 = vmul.f32 %v959, %v959
        %v1066 = vmul.f32 %v1030, %v1030
        %v1067 = vmul.f32 %v1032, %v1032
        %v1068 = vmul.f32 %v961, %v961
        %v1069 = vmul.f32 %v963, %v963
        %v1070 = vmul.f32 %v1034, %v1034
        %v1071 = vmul.f32 %v1036, %v1036
        %v1072 = vmul.f32 %v967, %v967
        %v1073 = vmul.f32 %v969, %v969
        %v1074 = vmul.f32 %v1040, %v1040
        %v1075 = vmul.f32 %v1042, %v1042
        %v1076 = vmul.f32 %v971, %v971
        %v1077 = vmul.f32 %v973, %v973
        %v1078 = vmul.f32 %v1044, %v1044
        %v1079 = vmul.f32 %v1046, %v1046
        %v1080 = vmul.f32 %v937, %v1048
        %v1081 = vmul.f32 %v939, %v1049
        %v1082 = vmul.f32 %v1010, %v1050
        %v1083 = vmul.f32 %v1012, %v1051
        %v1084 = vmul.f32 %v941, %v1052
        %v1085 = vmul.f32 %v943, %v1053
        %v1086 = vmul.f32 %v1014, %v1054
        %v1087 = vmul.f32 %v1016, %v1055
        %v1088 = vmul.f32 %v947, %v1056
        %v1089 = vmul.f32 %v949, %v1057
        %v1090 = vmul.f32 %v1020, %v1058
        %v1091 = vmul.f32 %v1022, %v1059
        %v1092 = vmul.f32 %v951, %v1060
        %v1093 = vmul.f32 %v953, %v1061
        %v1094 = vmul.f32 %v1024, %v1062
        %v1095 = vmul.f32 %v1026, %v1063
        %v1096 = vmul.f32 %v957, %v1064
        %v1097 = vmul.f32 %v959, %v1065
        %v1098 = vmul.f32 %v1030, %v1066
        %v1099 = vmul.f32 %v1032, %v1067
        %v1100 = vmul.f32 %v961, %v1068
        %v1101 = vmul.f32 %v963, %v1069
        %v1102 = vmul.f32 %v1034, %v1070
        %v1103 = vmul.f32 %v1036, %v1071
        %v1104 = vmul.f32 %v967, %v1072
        %v1105 = vmul.f32 %v969, %v1073
        %v1106 = vmul.f32 %v1040, %v1074
        %v1107 = vmul.f32 %v1042, %v1075
        %v1108 = vmul.f32 %v971, %v1076
        %v1109 = vmul.f32 %v973, %v1077
        %v1110 = vmul.f32 %v1044, %v1078
        %v1111 = vmul.f32 %v1046, %v1079
        %v1112 = vmul.f32 %v1080, 0.044715
        %v1113 = vmul.f32 %v1081, 0.044715
        %v1114 = vmul.f32 %v1082, 0.044715
        %v1115 = vmul.f32 %v1083, 0.044715
        %v1116 = vmul.f32 %v1084, 0.044715
        %v1117 = vmul.f32 %v1085, 0.044715
        %v1118 = vmul.f32 %v1086, 0.044715
        %v1119 = vmul.f32 %v1087, 0.044715
        %v1120 = vmul.f32 %v1088, 0.044715
        %v1121 = vmul.f32 %v1089, 0.044715
        %v1122 = vmul.f32 %v1090, 0.044715
        %v1123 = vmul.f32 %v1091, 0.044715
        %v1124 = vmul.f32 %v1092, 0.044715
        %v1125 = vmul.f32 %v1093, 0.044715
        %v1126 = vmul.f32 %v1094, 0.044715
        %v1127 = vmul.f32 %v1095, 0.044715
        %v1128 = vmul.f32 %v1096, 0.044715
        %v1129 = vmul.f32 %v1097, 0.044715
        %v1130 = vmul.f32 %v1098, 0.044715
        %v1131 = vmul.f32 %v1099, 0.044715
        %v1132 = vmul.f32 %v1100, 0.044715
        %v1133 = vmul.f32 %v1101, 0.044715
        %v1134 = vmul.f32 %v1102, 0.044715
        %v1135 = vmul.f32 %v1103, 0.044715
        %v1136 = vmul.f32 %v1104, 0.044715
        %v1137 = vmul.f32 %v1105, 0.044715
        %v1138 = vmul.f32 %v1106, 0.044715
        %v1139 = vmul.f32 %v1107, 0.044715
        %v1140 = vmul.f32 %v1108, 0.044715
        %v1141 = vmul.f32 %v1109, 0.044715
        %v1142 = vmul.f32 %v1110, 0.044715
        %v1143 = vmul.f32 %v1111, 0.044715
        %v1144 = vadd.f32 %v937, %v1112
        %v1145 = vadd.f32 %v939, %v1113
        %v1146 = vadd.f32 %v1010, %v1114
        %v1147 = vadd.f32 %v1012, %v1115
        %v1148 = vadd.f32 %v941, %v1116
        %v1149 = vadd.f32 %v943, %v1117
        %v1150 = vadd.f32 %v1014, %v1118
        %v1151 = vadd.f32 %v1016, %v1119
        %v1152 = vadd.f32 %v947, %v1120
        %v1153 = vadd.f32 %v949, %v1121
        %v1154 = vadd.f32 %v1020, %v1122
        %v1155 = vadd.f32 %v1022, %v1123
        %v1156 = vadd.f32 %v951, %v1124
        %v1157 = vadd.f32 %v953, %v1125
        %v1158 = vadd.f32 %v1024, %v1126
        %v1159 = vadd.f32 %v1026, %v1127
        %v1160 = vadd.f32 %v957, %v1128
        %v1161 = vadd.f32 %v959, %v1129
        %v1162 = vadd.f32 %v1030, %v1130
        %v1163 = vadd.f32 %v1032, %v1131
        %v1164 = vadd.f32 %v961, %v1132
        %v1165 = vadd.f32 %v963, %v1133
        %v1166 = vadd.f32 %v1034, %v1134
        %v1167 = vadd.f32 %v1036, %v1135
        %v1168 = vadd.f32 %v967, %v1136
        %v1169 = vadd.f32 %v969, %v1137
        %v1170 = vadd.f32 %v1040, %v1138
        %v1171 = vadd.f32 %v1042, %v1139
        %v1172 = vadd.f32 %v971, %v1140
        %v1173 = vadd.f32 %v973, %v1141
        %v1174 = vadd.f32 %v1044, %v1142
        %v1175 = vadd.f32 %v1046, %v1143
        %v1176 = vmul.f32 %v1144, 0.7978846
        %v1177 = vmul.f32 %v1145, 0.7978846
        %v1178 = vmul.f32 %v1146, 0.7978846
        %v1179 = vmul.f32 %v1147, 0.7978846
        %v1180 = vmul.f32 %v1148, 0.7978846
        %v1181 = vmul.f32 %v1149, 0.7978846
        %v1182 = vmul.f32 %v1150, 0.7978846
        %v1183 = vmul.f32 %v1151, 0.7978846
        %v1184 = vmul.f32 %v1152, 0.7978846
        %v1185 = vmul.f32 %v1153, 0.7978846
        %v1186 = vmul.f32 %v1154, 0.7978846
        %v1187 = vmul.f32 %v1155, 0.7978846
        %v1188 = vmul.f32 %v1156, 0.7978846
        %v1189 = vmul.f32 %v1157, 0.7978846
        %v1190 = vmul.f32 %v1158, 0.7978846
        %v1191 = vmul.f32 %v1159, 0.7978846
        %v1192 = vmul.f32 %v1160, 0.7978846
        %v1193 = vmul.f32 %v1161, 0.7978846
        %v1194 = vmul.f32 %v1162, 0.7978846
        %v1195 = vmul.f32 %v1163, 0.7978846
        %v1196 = vmul.f32 %v1164, 0.7978846
        %v1197 = vmul.f32 %v1165, 0.7978846
        %v1198 = vmul.f32 %v1166, 0.7978846
        %v1199 = vmul.f32 %v1167, 0.7978846
        %v1200 = vmul.f32 %v1168, 0.7978846
        %v1201 = vmul.f32 %v1169, 0.7978846
        %v1202 = vmul.f32 %v1170, 0.7978846
        %v1203 = vmul.f32 %v1171, 0.7978846
        %v1204 = vmul.f32 %v1172, 0.7978846
        %v1205 = vmul.f32 %v1173, 0.7978846
        %v1206 = vmul.f32 %v1174, 0.7978846
        %v1207 = vmul.f32 %v1175, 0.7978846
        %v1208 = vtanh.pop %v1176
        %v1209 = vtanh.pop %v1177
        %v1210 = vtanh.pop %v1178
        %v1211 = vtanh.pop %v1179
        %v1212 = vtanh.pop %v1180
        %v1213 = vtanh.pop %v1181
        %v1214 = vtanh.pop %v1182
        %v1215 = vtanh.pop %v1183
        %v1216 = vtanh.pop %v1184
        %v1217 = vtanh.pop %v1185
        %v1218 = vtanh.pop %v1186
        %v1219 = vtanh.pop %v1187
        %v1220 = vtanh.pop %v1188
        %v1221 = vtanh.pop %v1189
        %v1222 = vtanh.pop %v1190
        %v1223 = vtanh.pop %v1191
        %v1224 = vtanh.pop %v1192
        %v1225 = vtanh.pop %v1193
        %v1226 = vtanh.pop %v1194
        %v1227 = vtanh.pop %v1195
        %v1228 = vtanh.pop %v1196
        %v1229 = vtanh.pop %v1197
        %v1230 = vtanh.pop %v1198
        %v1231 = vtanh.pop %v1199
        %v1232 = vtanh.pop %v1200
        %v1233 = vtanh.pop %v1201
        %v1234 = vtanh.pop %v1202
        %v1235 = vtanh.pop %v1203
        %v1236 = vtanh.pop %v1204
        %v1237 = vtanh.pop %v1205
        %v1238 = vtanh.pop %v1206
        %v1239 = vtanh.pop %v1207
        %v1240 = vadd.f32 %v1208, 1.0
        %v1241 = vadd.f32 %v1209, 1.0
        %v1242 = vadd.f32 %v1210, 1.0
        %v1243 = vadd.f32 %v1211, 1.0
        %v1244 = vadd.f32 %v1212, 1.0
        %v1245 = vadd.f32 %v1213, 1.0
        %v1246 = vadd.f32 %v1214, 1.0
        %v1247 = vadd.f32 %v1215, 1.0
        %v1248 = vadd.f32 %v1216, 1.0
        %v1249 = vadd.f32 %v1217, 1.0
        %v1250 = vadd.f32 %v1218, 1.0
        %v1251 = vadd.f32 %v1219, 1.0
        %v1252 = vadd.f32 %v1220, 1.0
        %v1253 = vadd.f32 %v1221, 1.0
        %v1254 = vadd.f32 %v1222, 1.0
        %v1255 = vadd.f32 %v1223, 1.0
        %v1256 = vadd.f32 %v1224, 1.0
        %v1257 = vadd.f32 %v1225, 1.0
        %v1258 = vadd.f32 %v1226, 1.0
        %v1259 = vadd.f32 %v1227, 1.0
        %v1260 = vadd.f32 %v1228, 1.0
        %v1261 = vadd.f32 %v1229, 1.0
        %v1262 = vadd.f32 %v1230, 1.0
        %v1263 = vadd.f32 %v1231, 1.0
        %v1264 = vadd.f32 %v1232, 1.0
        %v1265 = vadd.f32 %v1233, 1.0
        %v1266 = vadd.f32 %v1234, 1.0
        %v1267 = vadd.f32 %v1235, 1.0
        %v1268 = vadd.f32 %v1236, 1.0
        %v1269 = vadd.f32 %v1237, 1.0
        %v1270 = vadd.f32 %v1238, 1.0
        %v1271 = vadd.f32 %v1239, 1.0
        %v1272 = vmul.f32 %v1240, 0.5
        %v1273 = vmul.f32 %v1241, 0.5
        %v1274 = vmul.f32 %v1242, 0.5
        %v1275 = vmul.f32 %v1243, 0.5
        %v1276 = vmul.f32 %v1244, 0.5
        %v1277 = vmul.f32 %v1245, 0.5
        %v1278 = vmul.f32 %v1246, 0.5
        %v1279 = vmul.f32 %v1247, 0.5
        %v1280 = vmul.f32 %v1248, 0.5
        %v1281 = vmul.f32 %v1249, 0.5
        %v1282 = vmul.f32 %v1250, 0.5
        %v1283 = vmul.f32 %v1251, 0.5
        %v1284 = vmul.f32 %v1252, 0.5
        %v1285 = vmul.f32 %v1253, 0.5
        %v1286 = vmul.f32 %v1254, 0.5
        %v1287 = vmul.f32 %v1255, 0.5
        %v1288 = vmul.f32 %v1256, 0.5
        %v1289 = vmul.f32 %v1257, 0.5
        %v1290 = vmul.f32 %v1258, 0.5
        %v1291 = vmul.f32 %v1259, 0.5
        %v1292 = vmul.f32 %v1260, 0.5
        %v1293 = vmul.f32 %v1261, 0.5
        %v1294 = vmul.f32 %v1262, 0.5
        %v1295 = vmul.f32 %v1263, 0.5
        %v1296 = vmul.f32 %v1264, 0.5
        %v1297 = vmul.f32 %v1265, 0.5
        %v1298 = vmul.f32 %v1266, 0.5
        %v1299 = vmul.f32 %v1267, 0.5
        %v1300 = vmul.f32 %v1268, 0.5
        %v1301 = vmul.f32 %v1269, 0.5
        %v1302 = vmul.f32 %v1270, 0.5
        %v1303 = vmul.f32 %v1271, 0.5
        %v1304 = vmul.f32 %v937, %v1272
        %v1305 = vmul.f32 %v939, %v1273
        %v1306 = vmul.f32 %v1010, %v1274
        %v1307 = vmul.f32 %v1012, %v1275
        %v1308 = vmul.f32 %v941, %v1276
        %v1309 = vmul.f32 %v943, %v1277
        %v1310 = vmul.f32 %v1014, %v1278
        %v1311 = vmul.f32 %v1016, %v1279
        %v1312 = vmul.f32 %v947, %v1280
        %v1313 = vmul.f32 %v949, %v1281
        %v1314 = vmul.f32 %v1020, %v1282
        %v1315 = vmul.f32 %v1022, %v1283
        %v1316 = vmul.f32 %v951, %v1284
        %v1317 = vmul.f32 %v953, %v1285
        %v1318 = vmul.f32 %v1024, %v1286
        %v1319 = vmul.f32 %v1026, %v1287
        %v1320 = vmul.f32 %v957, %v1288
        %v1321 = vmul.f32 %v959, %v1289
        %v1322 = vmul.f32 %v1030, %v1290
        %v1323 = vmul.f32 %v1032, %v1291
        %v1324 = vmul.f32 %v961, %v1292
        %v1325 = vmul.f32 %v963, %v1293
        %v1326 = vmul.f32 %v1034, %v1294
        %v1327 = vmul.f32 %v1036, %v1295
        %v1328 = vmul.f32 %v967, %v1296
        %v1329 = vmul.f32 %v969, %v1297
        %v1330 = vmul.f32 %v1040, %v1298
        %v1331 = vmul.f32 %v1042, %v1299
        %v1332 = vmul.f32 %v971, %v1300
        %v1333 = vmul.f32 %v973, %v1301
        %v1334 = vmul.f32 %v1044, %v1302
        %v1335 = vmul.f32 %v1046, %v1303
        %v1336 = vadd.f32 %v1304, %v1312
        %v1337 = vadd.f32 %v1305, %v1313
        %v1338 = vadd.f32 %v1306, %v1314
        %v1339 = vadd.f32 %v1307, %v1315
        %v1340 = vadd.f32 %v1308, %v1316
        %v1341 = vadd.f32 %v1309, %v1317
        %v1342 = vadd.f32 %v1310, %v1318
        %v1343 = vadd.f32 %v1311, %v1319
        %v1344 = vadd.f32 %v1320, %v1328
        %v1345 = vadd.f32 %v1321, %v1329
        %v1346 = vadd.f32 %v1322, %v1330
        %v1347 = vadd.f32 %v1323, %v1331
        %v1348 = vadd.f32 %v1324, %v1332
        %v1349 = vadd.f32 %v1325, %v1333
        %v1350 = vadd.f32 %v1326, %v1334
        %v1351 = vadd.f32 %v1327, %v1335
        %v1352 = vadd.f32 %v1336, %v1344
        %v1353 = vadd.f32 %v1337, %v1345
        %v1354 = vadd.f32 %v1338, %v1346
        %v1355 = vadd.f32 %v1339, %v1347
        %v1356 = vadd.f32 %v1340, %v1348
        %v1357 = vadd.f32 %v1341, %v1349
        %v1358 = vadd.f32 %v1342, %v1350
        %v1359 = vadd.f32 %v1343, %v1351
        %v1360 = vpack.c.bf16 %v1356, %v1352
        %v1361 = vpack.c.bf16 %v1357, %v1353
        %v1362 = vpack.c.bf16 %v1358, %v1354
        %v1363 = vpack.c.bf16 %v1359, %v1355
        %v1364 = vld [vmem:[#allocation11] sm:$0xf]
        %v1365 = vld [vmem:[#allocation11 + $0x4] sm:$0xf]
        %v1366 = vld [vmem:[#allocation11 + $0x8] sm:$0xf]
        %v1367 = vld [vmem:[#allocation11 + $0xc] sm:$0xf]
        %v1368 = vld [vmem:[#allocation11 + $0x10] sm:$0xf]
        %v1369 = vld [vmem:[#allocation11 + $0x14] sm:$0xf]
        %v1370 = vld [vmem:[#allocation11 + $0x18] sm:$0xf]
        %v1371 = vld [vmem:[#allocation11 + $0x1c] sm:$0xf]
        %v1372 = vld [vmem:[#allocation11 + $0x20] sm:$0xf]
        %v1373 = vld [vmem:[#allocation11 + $0x24] sm:$0xf]
        %v1374 = vld [vmem:[#allocation11 + $0x28] sm:$0xf]
        %v1375 = vld [vmem:[#allocation11 + $0x2c] sm:$0xf]
        %v1376 = vld [vmem:[#allocation11 + $0x30] sm:$0xf]
        %v1377 = vld [vmem:[#allocation11 + $0x34] sm:$0xf]
        %v1378 = vld [vmem:[#allocation11 + $0x38] sm:$0xf]
        %v1379 = vld [vmem:[#allocation11 + $0x3c] sm:$0xf]
        %v1380 = vld [vmem:[#allocation11 + $0x40] sm:$0xf]
        %v1381 = vld [vmem:[#allocation11 + $0x44] sm:$0xf]
        %v1382 = vld [vmem:[#allocation11 + $0x48] sm:$0xf]
        %v1383 = vld [vmem:[#allocation11 + $0x4c] sm:$0xf]
        %v1384 = vld [vmem:[#allocation11 + $0x50] sm:$0xf]
        %v1385 = vld [vmem:[#allocation11 + $0x54] sm:$0xf]
        %v1386 = vld [vmem:[#allocation11 + $0x58] sm:$0xf]
        %v1387 = vld [vmem:[#allocation11 + $0x5c] sm:$0xf]
        %v1388 = vld [vmem:[#allocation11 + $0x60] sm:$0xf]
        %v1389 = vld [vmem:[#allocation11 + $0x64] sm:$0xf]
        %v1390 = vld [vmem:[#allocation11 + $0x68] sm:$0xf]
        %v1391 = vld [vmem:[#allocation11 + $0x6c] sm:$0xf]
        %v1392 = vld [vmem:[#allocation11 + $0x70] sm:$0xf]
        %v1393 = vld [vmem:[#allocation11 + $0x74] sm:$0xf]
        %v1394 = vld [vmem:[#allocation11 + $0x78] sm:$0xf]
        %v1395 = vld [vmem:[#allocation11 + $0x7c] sm:$0xf]
        %v1396 = vld [vmem:[#allocation11 + $0x80] sm:$0xf]
        %v1397 = vld [vmem:[#allocation11 + $0x84] sm:$0xf]
        %v1398 = vld [vmem:[#allocation11 + $0x88] sm:$0xf]
        %v1399 = vld [vmem:[#allocation11 + $0x8c] sm:$0xf]
        %v1400 = vld [vmem:[#allocation11 + $0x90] sm:$0xf]
        %v1401 = vld [vmem:[#allocation11 + $0x94] sm:$0xf]
        %v1402 = vld [vmem:[#allocation11 + $0x98] sm:$0xf]
        %v1403 = vld [vmem:[#allocation11 + $0x9c] sm:$0xf]
        %v1404 = vld [vmem:[#allocation11 + $0xa0] sm:$0xf]
        %v1405 = vld [vmem:[#allocation11 + $0xa4] sm:$0xf]
        %v1406 = vld [vmem:[#allocation11 + $0xa8] sm:$0xf]
        %v1407 = vld [vmem:[#allocation11 + $0xac] sm:$0xf]
        %v1408 = vld [vmem:[#allocation11 + $0xb0] sm:$0xf]
        %v1409 = vld [vmem:[#allocation11 + $0xb4] sm:$0xf]
        %v1410 = vld [vmem:[#allocation11 + $0xb8] sm:$0xf]
        %v1411 = vld [vmem:[#allocation11 + $0xbc] sm:$0xf]
        %v1412 = vld [vmem:[#allocation11 + $0xc0] sm:$0xf]
        %v1413 = vld [vmem:[#allocation11 + $0xc4] sm:$0xf]
        %v1414 = vld [vmem:[#allocation11 + $0xc8] sm:$0xf]
        %v1415 = vld [vmem:[#allocation11 + $0xcc] sm:$0xf]
        %v1416 = vld [vmem:[#allocation11 + $0xd0] sm:$0xf]
        %v1417 = vld [vmem:[#allocation11 + $0xd4] sm:$0xf]
        %v1418 = vld [vmem:[#allocation11 + $0xd8] sm:$0xf]
        %v1419 = vld [vmem:[#allocation11 + $0xdc] sm:$0xf]
        %v1420 = vld [vmem:[#allocation11 + $0xe0] sm:$0xf]
        %v1421 = vld [vmem:[#allocation11 + $0xe4] sm:$0xf]
        %v1422 = vld [vmem:[#allocation11 + $0xe8] sm:$0xf]
        %v1423 = vld [vmem:[#allocation11 + $0xec] sm:$0xf]
        %v1424 = vld [vmem:[#allocation11 + $0xf0] sm:$0xf]
        %v1425 = vld [vmem:[#allocation11 + $0xf4] sm:$0xf]
        %v1426 = vld [vmem:[#allocation11 + $0xf8] sm:$0xf]
        %v1427 = vld [vmem:[#allocation11 + $0xfc] sm:$0xf]
        %v1428 = vld [vmem:[%s10] sm:$0x1]
        %v1430 = vlaneseq
        %v1431 = vshrl.u32 %v1430, 7
        %v1432 = vsub.s32 0, %v1431
        %v1433 = vrot.slane %v1428, %v1432
        %v1499 = vunpack.c.l.b16 %v1364
        %v1500 = vunpack.c.l.b16 %v1365
        %v1501 = vunpack.c.l.b16 %v1366
        %v1502 = vunpack.c.l.b16 %v1367
        %v1503 = vunpack.c.l.b16 %v1368
        %v1504 = vunpack.c.l.b16 %v1369
        %v1505 = vunpack.c.l.b16 %v1370
        %v1506 = vunpack.c.l.b16 %v1371
        %v1507 = vunpack.c.l.b16 %v1372
        %v1508 = vunpack.c.l.b16 %v1373
        %v1509 = vunpack.c.l.b16 %v1374
        %v1510 = vunpack.c.l.b16 %v1375
        %v1511 = vunpack.c.l.b16 %v1376
        %v1512 = vunpack.c.l.b16 %v1377
        %v1513 = vunpack.c.l.b16 %v1378
        %v1514 = vunpack.c.l.b16 %v1379
        %v1515 = vunpack.c.l.b16 %v1380
        %v1516 = vunpack.c.l.b16 %v1381
        %v1517 = vunpack.c.l.b16 %v1382
        %v1518 = vunpack.c.l.b16 %v1383
        %v1519 = vunpack.c.l.b16 %v1384
        %v1520 = vunpack.c.l.b16 %v1385
        %v1521 = vunpack.c.l.b16 %v1386
        %v1522 = vunpack.c.l.b16 %v1387
        %v1523 = vunpack.c.l.b16 %v1388
        %v1524 = vunpack.c.l.b16 %v1389
        %v1525 = vunpack.c.l.b16 %v1390
        %v1526 = vunpack.c.l.b16 %v1391
        %v1527 = vunpack.c.l.b16 %v1392
        %v1528 = vunpack.c.l.b16 %v1393
        %v1529 = vunpack.c.l.b16 %v1394
        %v1530 = vunpack.c.l.b16 %v1395
        %v1531 = vunpack.c.l.b16 %v1396
        %v1532 = vunpack.c.l.b16 %v1397
        %v1533 = vunpack.c.l.b16 %v1398
        %v1534 = vunpack.c.l.b16 %v1399
        %v1535 = vunpack.c.l.b16 %v1400
        %v1536 = vunpack.c.l.b16 %v1401
        %v1537 = vunpack.c.l.b16 %v1402
        %v1538 = vunpack.c.l.b16 %v1403
        %v1539 = vunpack.c.l.b16 %v1404
        %v1540 = vunpack.c.l.b16 %v1405
        %v1541 = vunpack.c.l.b16 %v1406
        %v1542 = vunpack.c.l.b16 %v1407
        %v1543 = vunpack.c.l.b16 %v1408
        %v1544 = vunpack.c.l.b16 %v1409
        %v1545 = vunpack.c.l.b16 %v1410
        %v1546 = vunpack.c.l.b16 %v1411
        %v1547 = vunpack.c.l.b16 %v1412
        %v1548 = vunpack.c.l.b16 %v1413
        %v1549 = vunpack.c.l.b16 %v1414
        %v1550 = vunpack.c.l.b16 %v1415
        %v1551 = vunpack.c.l.b16 %v1416
        %v1552 = vunpack.c.l.b16 %v1417
        %v1553 = vunpack.c.l.b16 %v1418
        %v1554 = vunpack.c.l.b16 %v1419
        %v1555 = vunpack.c.l.b16 %v1420
        %v1556 = vunpack.c.l.b16 %v1421
        %v1557 = vunpack.c.l.b16 %v1422
        %v1558 = vunpack.c.l.b16 %v1423
        %v1559 = vunpack.c.l.b16 %v1424
        %v1560 = vunpack.c.l.b16 %v1425
        %v1561 = vunpack.c.l.b16 %v1426
        %v1562 = vunpack.c.l.b16 %v1427
        %v1563 = vpack.c.b16 %v1500, %v1499
        %v1564 = vpack.c.b16 %v1502, %v1501
        %v1565 = vpack.c.b16 %v1504, %v1503
        %v1566 = vpack.c.b16 %v1506, %v1505
        %v1567 = vpack.c.b16 %v1508, %v1507
        %v1568 = vpack.c.b16 %v1510, %v1509
        %v1569 = vpack.c.b16 %v1512, %v1511
        %v1570 = vpack.c.b16 %v1514, %v1513
        %v1571 = vpack.c.b16 %v1516, %v1515
        %v1572 = vpack.c.b16 %v1518, %v1517
        %v1573 = vpack.c.b16 %v1520, %v1519
        %v1574 = vpack.c.b16 %v1522, %v1521
        %v1575 = vpack.c.b16 %v1524, %v1523
        %v1576 = vpack.c.b16 %v1526, %v1525
        %v1577 = vpack.c.b16 %v1528, %v1527
        %v1578 = vpack.c.b16 %v1530, %v1529
        %v1579 = vpack.c.b16 %v1532, %v1531
        %v1580 = vpack.c.b16 %v1534, %v1533
        %v1581 = vpack.c.b16 %v1536, %v1535
        %v1582 = vpack.c.b16 %v1538, %v1537
        %v1583 = vpack.c.b16 %v1540, %v1539
        %v1584 = vpack.c.b16 %v1542, %v1541
        %v1585 = vpack.c.b16 %v1544, %v1543
        %v1586 = vpack.c.b16 %v1546, %v1545
        %v1587 = vpack.c.b16 %v1548, %v1547
        %v1588 = vpack.c.b16 %v1550, %v1549
        %v1589 = vpack.c.b16 %v1552, %v1551
        %v1590 = vpack.c.b16 %v1554, %v1553
        %v1591 = vpack.c.b16 %v1556, %v1555
        %v1592 = vpack.c.b16 %v1558, %v1557
        %v1593 = vpack.c.b16 %v1560, %v1559
        %v1594 = vpack.c.b16 %v1562, %v1561
        %1627 = vmatprep.subr.bf16.mxu0 0
        %1628 = vmatpush1.bf16.msra.mxu0 %v1563
        %1629 = vmatprep.subr.bf16.mxu0 0
        %1630 = vmatpush1.bf16.msra.mxu0 %v1564
        %1631 = vmatprep.subr.bf16.mxu0 0
        %1632 = vmatpush1.bf16.msra.mxu0 %v1565
        %1633 = vmatprep.subr.bf16.mxu0 0
        %1634 = vmatpush1.bf16.msra.mxu0 %v1566
        %1635 = vmatprep.subr.bf16.mxu0 0
        %1636 = vmatpush1.bf16.msra.mxu0 %v1567
        %1637 = vmatprep.subr.bf16.mxu0 0
        %1638 = vmatpush1.bf16.msra.mxu0 %v1568
        %1639 = vmatprep.subr.bf16.mxu0 0
        %1640 = vmatpush1.bf16.msra.mxu0 %v1569
        %1641 = vmatprep.subr.bf16.mxu0 0
        %1642 = vmatpush1.bf16.msra.mxu0 %v1570
        %1643 = vmatprep.subr.bf16.mxu0 0
        %1644 = vmatpush1.bf16.msra.mxu0 %v1571
        %1645 = vmatprep.subr.bf16.mxu0 0
        %1646 = vmatpush1.bf16.msra.mxu0 %v1572
        %1647 = vmatprep.subr.bf16.mxu0 0
        %1648 = vmatpush1.bf16.msra.mxu0 %v1573
        %1649 = vmatprep.subr.bf16.mxu0 0
        %1650 = vmatpush1.bf16.msra.mxu0 %v1574
        %1651 = vmatprep.subr.bf16.mxu0 0
        %1652 = vmatpush1.bf16.msra.mxu0 %v1575
        %1653 = vmatprep.subr.bf16.mxu0 0
        %1654 = vmatpush1.bf16.msra.mxu0 %v1576
        %1655 = vmatprep.subr.bf16.mxu0 0
        %1656 = vmatpush1.bf16.msra.mxu0 %v1577
        %1657 = vmatprep.subr.bf16.mxu0 0
        %1658 = vmatpush1.bf16.msra.mxu0 %v1578
        %1659 = vmatprep.mubr.bf16.mxu0 %v1361
        %1660 = vmatmul.mubr.bf16.gmra.mrb[0].mxu0 %v1360
        %v1661 = vpop.f32.mrb[0].mxu0
        %v1662 = vadd.f32 %v1433, %v1661
        %v1663 = vpop.f32.mrb[0].mxu0
        %v1664 = vpop.f32.mrb[0].mxu0
        %v1665 = vadd.f32 %v1433, %v1664
        %v1666 = vpop.f32.mrb[0].mxu0
        %1667 = vdwg.mxu0
        %1668 = vmatprep.subr.bf16.mxu0 0
        %1669 = vmatpush1.bf16.msra.mxu0 %v1579
        %1670 = vmatprep.subr.bf16.mxu0 0
        %1671 = vmatpush1.bf16.msra.mxu0 %v1580
        %1672 = vmatprep.subr.bf16.mxu0 0
        %1673 = vmatpush1.bf16.msra.mxu0 %v1581
        %1674 = vmatprep.subr.bf16.mxu0 0
        %1675 = vmatpush1.bf16.msra.mxu0 %v1582
        %1676 = vmatprep.subr.bf16.mxu0 0
        %1677 = vmatpush1.bf16.msra.mxu0 %v1583
        %1678 = vmatprep.subr.bf16.mxu0 0
        %1679 = vmatpush1.bf16.msra.mxu0 %v1584
        %1680 = vmatprep.subr.bf16.mxu0 0
        %1681 = vmatpush1.bf16.msra.mxu0 %v1585
        %1682 = vmatprep.subr.bf16.mxu0 0
        %1683 = vmatpush1.bf16.msra.mxu0 %v1586
        %1684 = vmatprep.subr.bf16.mxu0 0
        %1685 = vmatpush1.bf16.msra.mxu0 %v1587
        %1686 = vmatprep.subr.bf16.mxu0 0
        %1687 = vmatpush1.bf16.msra.mxu0 %v1588
        %1688 = vmatprep.subr.bf16.mxu0 0
        %1689 = vmatpush1.bf16.msra.mxu0 %v1589
        %1690 = vmatprep.subr.bf16.mxu0 0
        %1691 = vmatpush1.bf16.msra.mxu0 %v1590
        %1692 = vmatprep.subr.bf16.mxu0 0
        %1693 = vmatpush1.bf16.msra.mxu0 %v1591
        %1694 = vmatprep.subr.bf16.mxu0 0
        %1695 = vmatpush1.bf16.msra.mxu0 %v1592
        %1696 = vmatprep.subr.bf16.mxu0 0
        %1697 = vmatpush1.bf16.msra.mxu0 %v1593
        %1698 = vmatprep.subr.bf16.mxu0 0
        %1699 = vmatpush1.bf16.msra.mxu0 %v1594
        %1700 = vmatprep.mubr.bf16.mxu0 %v1363
        %1701 = vmatmul.mubr.bf16.gmra.mrb[0].mxu0 %v1362
        %v1702 = vpop.f32.mrb[0].mxu0
        %v1703 = vadd.f32 %v1662, %v1702
        %v1704 = vpop.f32.mrb[0].mxu0
        %v1705 = vpop.f32.mrb[0].mxu0
        %v1706 = vadd.f32 %v1665, %v1705
        %v1707 = vpop.f32.mrb[0].mxu0
        %1708 = vdwg.mxu0
        %v1709 = vmul.f32 %v548, 0.25
        %v1710 = vmul.f32 %v549, 0.25
        %v1711 = vadd.f32 %v1709, %v1703
        %v1712 = vadd.f32 %v1710, %v1706
        %1713 = vst [vmem:[%s487] sm:$0xff] %v1711
        %1714 = vst [vmem:[%s487 + $0x8] sm:$0xff] %v1712
        %s1715 = sand.u32 %s282, 1
        %s1716 = scalar_lea.sflag [#allocation5], %s1715
        %s1717 = sand.u32 %s282, 1
        %s1718 = smul.addr %s1717, 16
        %s1719 = scalar_lea.vmem [#allocation13], %s1718
        // Predicated region
        $region85: #{tpu_custom_call.1} parent=63 // pred_check
          %p1720 = pneg %p292
        $region86: #{tpu_custom_call.1} parent=63 // pred_check_branch
          %1722 = sbr.rel (%p1720) target = $region88
        $region87: #{tpu_custom_call.1} parent=63 // pred_region
          %s1723 = smul.u32 2, %s33
          %s1725 = ssub.s32 256, 256
          %1726 = vsyncadd %s1716, %s1725
          %s1727 = smul.addr %s1723, 128
          %s1728 = scalar_lea.hbm %s11, %s1727
          %s1729 = sshll.u32 %s1719, 4
          %s1730 = int_to_ptr.vmem [resolvable:$true] %s1729
          %1735 = dma.vmem_to_hbm [thread:$0]  %s1730, 256, %s1728, %s1716, 128, 128, 8
        $region88: #{tpu_custom_call.1} parent=63 // pred_fallthru
          _
      $region64: #{tpu_custom_call.1} parent=5 // pred_fallthru
        _
      %p1736 = scmp.le.s32.totalorder 2, %s28
      // Predicated region
      $region89: #{tpu_custom_call.1} parent=5 // pred_check
        %p1737 = pneg %p1736
      $region90: #{tpu_custom_call.1} parent=5 // pred_check_branch
        %1739 = sbr.rel (%p1737) target = $region92
      $region91: #{tpu_custom_call.1} parent=5 // pred_region
        %s1740 = ssub.s32 %s28, 2
        // Predicated region
        $region93: #{tpu_custom_call.1} parent=91 // pred_check
          %p1741 = pneg %p298
        $region94: #{tpu_custom_call.1} parent=91 // pred_check_branch
          %1743 = sbr.rel (%p1741) target = $region96
        $region95: #{tpu_custom_call.1} parent=91 // pred_region
          %s1744 = sand.u32 %s283, 1
          %s1745 = scalar_lea.sflag [#allocation5], %s1744
          %s1746 = sand.u32 %s283, 1
          %s1747 = smul.addr %s1746, 16
          %s1748 = scalar_lea.vmem [#allocation13], %s1747
          %1749 = dma.done %s1745, 256
        $region96: #{tpu_custom_call.1} parent=91 // pred_fallthru
          _
      $region92: #{tpu_custom_call.1} parent=5 // pred_fallthru
        _
    $region6: #{tpu_custom_call.1} parent=1 // loop_footer
      %s32 = sadd.s32 1, %s28
    $region7: #{tpu_custom_call.1} parent=1 // loop_footer_branch
      %27 = sbr.rel target = $region3
    $region8: #{tpu_custom_call.1} parent=1 // loop_exit
      _
    %1750 = vsyncpa [#allocation4], 1
    %s1751 = scalar_lea.sflag [#allocation4], 1
    %1752 = vsyncpa %s1751, 1
    %1753 = vsyncpa [#allocation9], 1
    %s1754 = scalar_lea.sflag [#allocation9], 1
    %1755 = vsyncpa %s1754, 1
    %1756 = vsyncpa [#allocation12], 1
    %1757 = vsyncpa [#allocation5], 1
    %s1758 = scalar_lea.sflag [#allocation5], 1
    %1759 = vsyncpa %s1758, 1
    %1760 = vsyncpa [#allocation6], 1
    %s1761 = scalar_lea.sflag [#allocation6], 1
    %1762 = vsyncpa %s1761, 1

</llo_original>
